<compile_context>
chip_gen: v7x
topology: tpu7x:2x2x1
jax: 0.10.0
libtpu: 0.0.40
codegen_flags: <defaults>
</compile_context>

<pallas_src>
import jax
import jax.numpy as jnp
from jax import lax
from jax.experimental import pallas as pl
from jax.experimental.pallas import tpu as pltpu


def _adj_adjust_kernel(h_ref, w1_ref, b1_ref, w2_ref, b2_ref, ao_ref, adj_ref, o_ref):
    # h_ref: (N, F) one (batch, channel) slice;  o_ref: (N, N)
    h = h_ref[...].astype(jnp.float32)

    # MLP: Linear -> tanh -> Linear (weights stored as (in, out), biases (1, out))
    z = jnp.dot(h, w1_ref[...].astype(jnp.float32),
                preferred_element_type=jnp.float32) + b1_ref[...].astype(jnp.float32)
    z = jnp.tanh(z)
    hm = jnp.dot(z, w2_ref[...].astype(jnp.float32),
                 preferred_element_type=jnp.float32) + b2_ref[...].astype(jnp.float32)

    # Attention scores: Wh1 @ Wh2^T == hm @ (a1 a2^T) @ hm^T  (rank-1 expansion keeps
    # every matmul a standard lane-dense MXU op).
    t = jnp.dot(hm, ao_ref[...], preferred_element_type=jnp.float32)          # (N, F)
    e = lax.dot_general(t, hm, (((1,), (1,)), ((), ())),
                        preferred_element_type=jnp.float32)                   # (N, N)
    e = jnp.tanh(e)

    keep = jnp.abs(adj_ref[...].astype(jnp.float32)) > 0.0
    o_ref[...] = jnp.where(keep, e, jnp.zeros_like(e)).astype(o_ref.dtype)


def adj_adjust_forward(h, adj, params, gnn_type="space"):
    """Pallas implementation of adj_adjust.forward.

    h:   (B, C, N, F)   (last dim = in_features after the optional 'time' transpose)
    adj: (N, N)         adjacency (broadcast over batch dims, as in the PyTorch use)
    params: (w1, b1, w2, b2, a) with w*: (F, F) in->out, b*: (1, F), a: (2F,)
    returns (B, C, N, N)
    """
    w1, b1, w2, b2, a = params
    if gnn_type == "time":
        h = jnp.swapaxes(h, 1, 2)  # matches torch h.transpose(1, 2)

    B, C, N, F = h.shape
    assert w1.shape == (F, F) and w2.shape == (F, F)
    assert a.shape == (2 * F,)

    # Rank-1 attention matrix a1 a2^T, computed once outside the kernel.
    a_outer = jnp.outer(a[:F], a[F:]).astype(jnp.float32)  # (F, F)

    return pl.pallas_call(
        _adj_adjust_kernel,
        out_shape=jax.ShapeDtypeStruct((B, C, N, N), h.dtype),
        grid=(B, C),
        in_specs=[
            pl.BlockSpec((None, None, N, F), lambda b, c: (b, c, 0, 0)),  # h slice
            pl.BlockSpec((F, F), lambda b, c: (0, 0)),                    # w1 (resident)
            pl.BlockSpec((1, F), lambda b, c: (0, 0)),                    # b1
            pl.BlockSpec((F, F), lambda b, c: (0, 0)),                    # w2
            pl.BlockSpec((1, F), lambda b, c: (0, 0)),                    # b2
            pl.BlockSpec((F, F), lambda b, c: (0, 0)),                    # a1 a2^T
            pl.BlockSpec((N, N), lambda b, c: (0, 0)),                    # adj
        ],
        out_specs=pl.BlockSpec((None, None, N, N), lambda b, c: (b, c, 0, 0)),
        compiler_params=pltpu.CompilerParams(
            dimension_semantics=("parallel", "parallel")
        ),
    )(h, w1, b1, w2, b2, a_outer, adj)


def adj_adjust_ref(h, adj, params, gnn_type="space"):
    """Pure-JAX reference of the PyTorch forward."""
    w1, b1, w2, b2, a = params
    if gnn_type == "time":
        h = jnp.swapaxes(h, 1, 2)
    F = w1.shape[0]
    z = jnp.tanh(h @ w1 + b1)
    hm = z @ w2 + b2
    wh1 = hm @ a[:F].reshape(F, 1)                 # (..., N, 1)
    wh2 = hm @ a[F:].reshape(F, 1)                 # (..., N, 1)
    e = jnp.tanh(wh1 @ jnp.swapaxes(wh2, -1, -2))  # (..., N, N)
    return jnp.where(jnp.abs(adj) > 0, e, jnp.zeros_like(e))


if __name__ == "__main__":
    # Precise f32 matmuls for both kernel tracing and the XLA reference.
    jax.config.update("jax_default_matmul_precision", "highest")

    key = jax.random.PRNGKey(0)
    B, C, N, F = 2, 4, 16, 32          # batch, channels, nodes, in_features
    gnn_type = "space"                 # 'time' path just adds a wrapper-side transpose

    ks = jax.random.split(key, 8)
    h = jax.random.normal(ks[0], (B, C, N, F), dtype=jnp.float32)
    w1 = jax.random.normal(ks[1], (F, F), dtype=jnp.float32) * (F ** -0.5)
    b1 = 0.1 * jax.random.normal(ks[2], (1, F), dtype=jnp.float32)
    w2 = jax.random.normal(ks[3], (F, F), dtype=jnp.float32) * (F ** -0.5)
    b2 = 0.1 * jax.random.normal(ks[4], (1, F), dtype=jnp.float32)
    a = 0.1 * jax.random.normal(ks[5], (2 * F,), dtype=jnp.float32)
    adj_vals = jax.random.normal(ks[6], (N, N), dtype=jnp.float32)
    adj = jnp.where(jax.random.uniform(ks[7], (N, N)) > 0.5, adj_vals, 0.0)

    params = (w1, b1, w2, b2, a)

    out = adj_adjust_forward(h, adj, params, gnn_type=gnn_type)
    out = jax.block_until_ready(out)

    ref = adj_adjust_ref(h, adj, params, gnn_type=gnn_type)
    assert out.shape == (B, C, N, N), out.shape
    max_err = float(jnp.max(jnp.abs(out - ref)))
    assert jnp.allclose(out, ref, atol=2e-3, rtol=2e-3), f"mismatch vs reference: {max_err}"

    print("KERNEL_OK")
</pallas_src>

<mosaic_0001>
module attributes {stable_mosaic.version = 11 : i64} {
  func.func @_adj_adjust_kernel(%arg0: i32, %arg1: i32, %arg2: memref<1x1x16x32xf32, #tpu.memory_space<vmem>>, %arg3: memref<32x32xf32, #tpu.memory_space<vmem>>, %arg4: memref<1x32xf32, #tpu.memory_space<vmem>>, %arg5: memref<32x32xf32, #tpu.memory_space<vmem>>, %arg6: memref<1x32xf32, #tpu.memory_space<vmem>>, %arg7: memref<32x32xf32, #tpu.memory_space<vmem>>, %arg8: memref<16x16xf32, #tpu.memory_space<vmem>>, %arg9: memref<1x1x16x16xf32, #tpu.memory_space<vmem>>) attributes {dimension_semantics = [#tpu.dimension_semantics<parallel>, #tpu.dimension_semantics<parallel>], iteration_bounds = array<i64: 2, 4>, scalar_prefetch = 0 : i64, scratch_operands = 0 : i64, tpu.core_type = #tpu.core_type<tc>, window_params = [{transform_indices = @transform_0, window_bounds = array<i64: 1, 1, 16, 32>}, {pipeline_mode = #tpu.pipeline_mode<synchronous>, transform_indices = @transform_1, window_bounds = array<i64: 32, 32>}, {pipeline_mode = #tpu.pipeline_mode<synchronous>, transform_indices = @transform_2, window_bounds = array<i64: 1, 32>}, {pipeline_mode = #tpu.pipeline_mode<synchronous>, transform_indices = @transform_3, window_bounds = array<i64: 32, 32>}, {pipeline_mode = #tpu.pipeline_mode<synchronous>, transform_indices = @transform_4, window_bounds = array<i64: 1, 32>}, {pipeline_mode = #tpu.pipeline_mode<synchronous>, transform_indices = @transform_5, window_bounds = array<i64: 32, 32>}, {pipeline_mode = #tpu.pipeline_mode<synchronous>, transform_indices = @transform_6, window_bounds = array<i64: 16, 16>}, {transform_indices = @transform_7, window_bounds = array<i64: 1, 1, 16, 16>}]} {
    %c0 = arith.constant 0 : index
    %c0_0 = arith.constant 0 : index
    %c0_1 = arith.constant 0 : index
    %c0_2 = arith.constant 0 : index
    %0 = vector.load %arg2[%c0, %c0_0, %c0_1, %c0_2] : memref<1x1x16x32xf32, #tpu.memory_space<vmem>>, vector<1x1x16x32xf32>
    %1 = vector.shape_cast %0 : vector<1x1x16x32xf32> to vector<16x32xf32>
    %c0_3 = arith.constant 0 : index
    %c0_4 = arith.constant 0 : index
    %2 = vector.load %arg3[%c0_3, %c0_4] : memref<32x32xf32, #tpu.memory_space<vmem>>, vector<32x32xf32>
    %cst = arith.constant dense<0.000000e+00> : vector<16x32xf32>
    %3 = tpu.matmul %1, %2, %cst {dimension_numbers = #tpu.dot_dimension_numbers<[1], [0], [0], [1], [0, 0, 1, 1], [], []>, precision = #tpu.contract_precision<fp32>} : vector<16x32xf32>, vector<32x32xf32>, vector<16x32xf32> -> vector<16x32xf32>
    %c0_5 = arith.constant 0 : index
    %c0_6 = arith.constant 0 : index
    %4 = vector.load %arg4[%c0_5, %c0_6] : memref<1x32xf32, #tpu.memory_space<vmem>>, vector<1x32xf32>
    %5 = vector.broadcast %4 : vector<1x32xf32> to vector<16x32xf32>
    %6 = arith.addf %3, %5 : vector<16x32xf32>
    %7 = math.tanh %6 : vector<16x32xf32>
    %c0_7 = arith.constant 0 : index
    %c0_8 = arith.constant 0 : index
    %8 = vector.load %arg5[%c0_7, %c0_8] : memref<32x32xf32, #tpu.memory_space<vmem>>, vector<32x32xf32>
    %cst_9 = arith.constant dense<0.000000e+00> : vector<16x32xf32>
    %9 = tpu.matmul %7, %8, %cst_9 {dimension_numbers = #tpu.dot_dimension_numbers<[1], [0], [0], [1], [0, 0, 1, 1], [], []>, precision = #tpu.contract_precision<fp32>} : vector<16x32xf32>, vector<32x32xf32>, vector<16x32xf32> -> vector<16x32xf32>
    %c0_10 = arith.constant 0 : index
    %c0_11 = arith.constant 0 : index
    %10 = vector.load %arg6[%c0_10, %c0_11] : memref<1x32xf32, #tpu.memory_space<vmem>>, vector<1x32xf32>
    %11 = vector.broadcast %10 : vector<1x32xf32> to vector<16x32xf32>
    %12 = arith.addf %9, %11 : vector<16x32xf32>
    %c0_12 = arith.constant 0 : index
    %c0_13 = arith.constant 0 : index
    %13 = vector.load %arg7[%c0_12, %c0_13] : memref<32x32xf32, #tpu.memory_space<vmem>>, vector<32x32xf32>
    %cst_14 = arith.constant dense<0.000000e+00> : vector<16x32xf32>
    %14 = tpu.matmul %12, %13, %cst_14 {dimension_numbers = #tpu.dot_dimension_numbers<[1], [0], [0], [1], [0, 0, 1, 1], [], []>, precision = #tpu.contract_precision<fp32>} : vector<16x32xf32>, vector<32x32xf32>, vector<16x32xf32> -> vector<16x32xf32>
    %cst_15 = arith.constant dense<0.000000e+00> : vector<16x16xf32>
    %15 = tpu.matmul %14, %12, %cst_15 {dimension_numbers = #tpu.dot_dimension_numbers<[1], [1], [0], [0], [0, 0, 1, 0], [], []>, precision = #tpu.contract_precision<fp32>} : vector<16x32xf32>, vector<16x32xf32>, vector<16x16xf32> -> vector<16x16xf32>
    %16 = math.tanh %15 : vector<16x16xf32>
    %c0_16 = arith.constant 0 : index
    %c0_17 = arith.constant 0 : index
    %17 = vector.load %arg8[%c0_16, %c0_17] : memref<16x16xf32, #tpu.memory_space<vmem>>, vector<16x16xf32>
    %18 = math.absf %17 : vector<16x16xf32>
    %cst_18 = arith.constant 0.000000e+00 : f32
    %19 = vector.broadcast %cst_18 : f32 to vector<16x16xf32>
    %20 = arith.cmpf ogt, %18, %19 : vector<16x16xf32>
    %cst_19 = arith.constant 0.000000e+00 : f32
    %21 = vector.broadcast %cst_19 : f32 to vector<16x16xf32>
    %22 = arith.select %20, %16, %21 : vector<16x16xi1>, vector<16x16xf32>
    %c0_20 = arith.constant 0 : index
    %c0_21 = arith.constant 0 : index
    %c0_22 = arith.constant 0 : index
    %c0_23 = arith.constant 0 : index
    %23 = vector.load %arg9[%c0_20, %c0_21, %c0_22, %c0_23] : memref<1x1x16x16xf32, #tpu.memory_space<vmem>>, vector<1x1x16x16xf32>
    %24 = vector.shape_cast %23 : vector<1x1x16x16xf32> to vector<16x16xf32>
    %25 = vector.shape_cast %22 : vector<16x16xf32> to vector<1x1x16x16xf32>
    tpu.vector_store %arg9[%c0_20, %c0_21, %c0_22, %c0_23], %25 {strides = array<i32>} : memref<1x1x16x16xf32, #tpu.memory_space<vmem>>, vector<1x1x16x16xf32>,
    return
  }
  func.func @transform_0(%arg0: i32, %arg1: i32) -> (i32, i32, i32, i32) {
    %c0_i32 = arith.constant 0 : i32
    %c0_i32_0 = arith.constant 0 : i32
    %c0_i32_1 = arith.constant 0 : i32
    return %arg0, %arg1, %c0_i32, %c0_i32_0 : i32, i32, i32, i32
  }
  func.func @transform_1(%arg0: i32, %arg1: i32) -> (i32, i32) {
    %c0_i32 = arith.constant 0 : i32
    %c0_i32_0 = arith.constant 0 : i32
    %c0_i32_1 = arith.constant 0 : i32
    return %c0_i32, %c0_i32_0 : i32, i32
  }
  func.func @transform_2(%arg0: i32, %arg1: i32) -> (i32, i32) {
    %c0_i32 = arith.constant 0 : i32
    %c0_i32_0 = arith.constant 0 : i32
    %c0_i32_1 = arith.constant 0 : i32
    return %c0_i32, %c0_i32_0 : i32, i32
  }
  func.func @transform_3(%arg0: i32, %arg1: i32) -> (i32, i32) {
    %c0_i32 = arith.constant 0 : i32
    %c0_i32_0 = arith.constant 0 : i32
    %c0_i32_1 = arith.constant 0 : i32
    return %c0_i32, %c0_i32_0 : i32, i32
  }
  func.func @transform_4(%arg0: i32, %arg1: i32) -> (i32, i32) {
    %c0_i32 = arith.constant 0 : i32
    %c0_i32_0 = arith.constant 0 : i32
    %c0_i32_1 = arith.constant 0 : i32
    return %c0_i32, %c0_i32_0 : i32, i32
  }
  func.func @transform_5(%arg0: i32, %arg1: i32) -> (i32, i32) {
    %c0_i32 = arith.constant 0 : i32
    %c0_i32_0 = arith.constant 0 : i32
    %c0_i32_1 = arith.constant 0 : i32
    return %c0_i32, %c0_i32_0 : i32, i32
  }
  func.func @transform_6(%arg0: i32, %arg1: i32) -> (i32, i32) {
    %c0_i32 = arith.constant 0 : i32
    %c0_i32_0 = arith.constant 0 : i32
    %c0_i32_1 = arith.constant 0 : i32
    return %c0_i32, %c0_i32_0 : i32, i32
  }
  func.func @transform_7(%arg0: i32, %arg1: i32) -> (i32, i32, i32, i32) {
    %c0_i32 = arith.constant 0 : i32
    %c0_i32_0 = arith.constant 0 : i32
    %c0_i32_1 = arith.constant 0 : i32
    return %arg0, %arg1, %c0_i32, %c0_i32_0 : i32, i32, i32, i32
  }
}

</mosaic_0001>

<llo_original>
// kernel: tpu_custom_call.1
$region0: #{tpu_custom_call.1}
  #allocation0 [shape = 'u32[]', space=smem, size = 0x4, offset = 0x4, fixed_abs, tag = 'smem constant byte address 0x4 - core index']
  #allocation1 [shape = 'u32[144,128]{1,0:T(1,128)}', space=vmem, size = 0x12000, scoped, tag = 'internal scratch']
  %s0 = inlined_call_operand.hbm [shape: f32[2,4,16,32], index: 0, kind: input, shape index: {}]
  %s1 = inlined_call_operand.hbm [shape: f32[32,32], index: 1, kind: input, shape index: {}]
  %s2 = inlined_call_operand.vmem [shape: f32[1,32], index: 2, kind: input, shape index: {}]
  %s3 = inlined_call_operand.hbm [shape: f32[32,32], index: 3, kind: input, shape index: {}]
  %s4 = inlined_call_operand.vmem [shape: f32[1,32], index: 4, kind: input, shape index: {}]
  %s5 = inlined_call_operand.hbm [shape: f32[32,32], index: 5, kind: input, shape index: {}]
  %s6 = inlined_call_operand.vmem [shape: f32[16,16], index: 6, kind: input, shape index: {}]
  %s7 = inlined_call_operand.hbm [shape: f32[2,4,16,16], index: 7, kind: output, shape index: {}]
  %s8 = sld [smem:[#allocation0]]
  $region77: #{tpu_custom_call.1} parent=0
    _
  %s10 = ssub.s32 1, %s8
  %s11 = scalar_select 0, %s10, %s8
  $region1: #{tpu_custom_call.1} parent=0
    #allocation2 [shape = 'u8[16384]{0}', space=vmem, size = 0x4000, scoped, tag = 'input window, operand 0']
    #allocation3 [shape = 's32[2]{0}', space=sflag, size = 0x8, scoped, tag = 'scoped memory for tpu_custom_call.1']
    #allocation4 [shape = 's32[2]{0}', space=sflag, size = 0x8, scoped, tag = 'scoped memory for tpu_custom_call.1']
    #allocation5 [shape = 'u8[16384]{0}', space=vmem, size = 0x4000, scoped, tag = 'input window, operand 1, single buffered']
    #allocation6 [shape = 's32[1]{0}', space=sflag, size = 0x4, scoped, tag = 'scoped memory for tpu_custom_call.1']
    #allocation7 [shape = 'u8[16384]{0}', space=vmem, size = 0x4000, scoped, tag = 'input window, operand 3, single buffered']
    #allocation8 [shape = 'u8[16384]{0}', space=vmem, size = 0x4000, scoped, tag = 'input window, operand 5, single buffered']
    #allocation9 [shape = 's32[1]{0}', space=sflag, size = 0x4, scoped, tag = 'scoped memory for tpu_custom_call.1']
    #allocation10 [shape = 'u8[16384]{0}', space=vmem, size = 0x4000, scoped, tag = 'output window, operand 0']
    %12 = vsyncpa [#allocation3], 0
    %s13 = scalar_lea.sflag [#allocation3], 1
    %14 = vsyncpa %s13, 0
    %15 = vsyncpa [#allocation6], 0
    %16 = vsyncpa [#allocation9], 0
    %17 = vsyncpa [#allocation4], 0
    %s18 = scalar_lea.sflag [#allocation4], 1
    %19 = vsyncpa %s18, 0
    loop: start=0, step=1, limit=10
    $region2: #{tpu_custom_call.1} parent=1 // loop_pre_header
      _
    $region3: #{tpu_custom_call.1} parent=1 // loop_header
      %s21 = sphi 0, %s25
      %p22 = scmp.ge.s32.totalorder %s21, 10
      %s28 = sphi 0, %s40
      %s29 = sphi 0, %s36
      %s30 = sphi 0, %s28
      %s31 = sphi 0, %s29
      %s32 = sphi 0, %s30
      %s33 = sphi 0, %s31
      %s45 = sphi 0, %s47
      %s48 = sphi 0, %s45
      %s49 = sphi 0, %s48
      %s65 = sphi 0, %s49
      %s69 = sphi 0, %s69
      %s71 = sphi 0, %s69
      %s72 = sphi 0, %s71
      %s86 = sphi 0, %s72
      %s90 = sphi 0, %s90
      %s92 = sphi 0, %s90
      %s93 = sphi 0, %s92
      %s107 = sphi 0, %s93
      %s111 = sphi 0, %s111
      %s113 = sphi 0, %s111
      %s114 = sphi 0, %s113
      %s128 = sphi 0, %s114
      %s132 = sphi 0, %s132
      %s134 = sphi 0, %s132
      %s135 = sphi 0, %s134
      %s149 = sphi 0, %s135
      %s153 = sphi 0, %s153
      %s155 = sphi 0, %s153
      %s156 = sphi 0, %s155
      %s170 = sphi 0, %s156
      %s174 = sphi 0, %s174
      %s176 = sphi 0, %s174
      %s177 = sphi 0, %s176
      %s191 = sphi 0, %s177
      %s199 = sphi 0, %s201
      %s202 = sphi 0, %s199
      %s203 = sphi 0, %s202
      %s219 = sphi 0, %s203
    $region4: #{tpu_custom_call.1} parent=1 // loop_header_branch
      %24 = sbr.rel (%p22) target = $region8
    $region5: #{tpu_custom_call.1} parent=1 // loop_body
      %s26 = ssub.s32 %s21, 1
      %s27 = ssub.s32 %s21, 2
      %s34 = sadd.s32 1, %s29
      %p35 = scmp.ge.s32.totalorder %s34, 4
      %s36 = scalar_select %p35, 0, %s34
      %s37 = sadd.s32 1, %s28
      %s38 = scalar_select %p35, %s37, %s28
      %p39 = scmp.ge.s32.totalorder %s38, 2
      %s40 = scalar_select %p39, 0, %s38
      %s41 = ssub.s32 %s28, %s40
      %s42 = ssub.s32 %s29, %s36
      %s43 = sor.u32 %s41, %s42
      %p44 = scmp.eq.s32.totalorder %s43, 0
      %s46 = sadd.s32 %s45, 1
      %s47 = scalar_select %p44, %s45, %s46
      %p50 = pneg %p44
      %p51 = scmp.eq.s32.totalorder %s21, 7
      %p52 = por %p50, %p51
      %p53 = scmp.ne.s32.totalorder %s45, %s48
      %p54 = scmp.eq.s32.totalorder %s21, 0
      %p55 = por %p53, %p54
      %p56 = scmp.ne.s32.totalorder %s45, %s48
      %p57 = scmp.eq.s32.totalorder %s26, 7
      %p58 = por %p56, %p57
      %p59 = scmp.ne.s32.totalorder %s48, %s49
      %p60 = scmp.eq.s32.totalorder %s26, 0
      %p61 = por %p59, %p60
      %p62 = scmp.ne.s32.totalorder %s48, %s49
      %p63 = scmp.eq.s32.totalorder %s27, 7
      %p64 = por %p62, %p63
      %p66 = scmp.ne.s32.totalorder %s49, %s65
      %p67 = scmp.eq.s32.totalorder %s27, 0
      %p68 = por %p66, %p67
      %s70 = sadd.s32 %s69, 1
      %p73 = scmp.eq.s32.totalorder %s21, 7
      %p74 = scmp.ne.s32.totalorder %s69, %s71
      %p75 = scmp.eq.s32.totalorder %s21, 0
      %p76 = por %p74, %p75
      %p77 = scmp.ne.s32.totalorder %s69, %s71
      %p78 = scmp.eq.s32.totalorder %s26, 7
      %p79 = por %p77, %p78
      %p80 = scmp.ne.s32.totalorder %s71, %s72
      %p81 = scmp.eq.s32.totalorder %s26, 0
      %p82 = por %p80, %p81
      %p83 = scmp.ne.s32.totalorder %s71, %s72
      %p84 = scmp.eq.s32.totalorder %s27, 7
      %p85 = por %p83, %p84
      %p87 = scmp.ne.s32.totalorder %s72, %s86
      %p88 = scmp.eq.s32.totalorder %s27, 0
      %p89 = por %p87, %p88
      %s91 = sadd.s32 %s90, 1
      %p94 = scmp.eq.s32.totalorder %s21, 7
      %p95 = scmp.ne.s32.totalorder %s90, %s92
      %p96 = scmp.eq.s32.totalorder %s21, 0
      %p97 = por %p95, %p96
      %p98 = scmp.ne.s32.totalorder %s90, %s92
      %p99 = scmp.eq.s32.totalorder %s26, 7
      %p100 = por %p98, %p99
      %p101 = scmp.ne.s32.totalorder %s92, %s93
      %p102 = scmp.eq.s32.totalorder %s26, 0
      %p103 = por %p101, %p102
      %p104 = scmp.ne.s32.totalorder %s92, %s93
      %p105 = scmp.eq.s32.totalorder %s27, 7
      %p106 = por %p104, %p105
      %p108 = scmp.ne.s32.totalorder %s93, %s107
      %p109 = scmp.eq.s32.totalorder %s27, 0
      %p110 = por %p108, %p109
      %s112 = sadd.s32 %s111, 1
      %p115 = scmp.eq.s32.totalorder %s21, 7
      %p116 = scmp.ne.s32.totalorder %s111, %s113
      %p117 = scmp.eq.s32.totalorder %s21, 0
      %p118 = por %p116, %p117
      %p119 = scmp.ne.s32.totalorder %s111, %s113
      %p120 = scmp.eq.s32.totalorder %s26, 7
      %p121 = por %p119, %p120
      %p122 = scmp.ne.s32.totalorder %s113, %s114
      %p123 = scmp.eq.s32.totalorder %s26, 0
      %p124 = por %p122, %p123
      %p125 = scmp.ne.s32.totalorder %s113, %s114
      %p126 = scmp.eq.s32.totalorder %s27, 7
      %p127 = por %p125, %p126
      %p129 = scmp.ne.s32.totalorder %s114, %s128
      %p130 = scmp.eq.s32.totalorder %s27, 0
      %p131 = por %p129, %p130
      %s133 = sadd.s32 %s132, 1
      %p136 = scmp.eq.s32.totalorder %s21, 7
      %p137 = scmp.ne.s32.totalorder %s132, %s134
      %p138 = scmp.eq.s32.totalorder %s21, 0
      %p139 = por %p137, %p138
      %p140 = scmp.ne.s32.totalorder %s132, %s134
      %p141 = scmp.eq.s32.totalorder %s26, 7
      %p142 = por %p140, %p141
      %p143 = scmp.ne.s32.totalorder %s134, %s135
      %p144 = scmp.eq.s32.totalorder %s26, 0
      %p145 = por %p143, %p144
      %p146 = scmp.ne.s32.totalorder %s134, %s135
      %p147 = scmp.eq.s32.totalorder %s27, 7
      %p148 = por %p146, %p147
      %p150 = scmp.ne.s32.totalorder %s135, %s149
      %p151 = scmp.eq.s32.totalorder %s27, 0
      %p152 = por %p150, %p151
      %s154 = sadd.s32 %s153, 1
      %p157 = scmp.eq.s32.totalorder %s21, 7
      %p158 = scmp.ne.s32.totalorder %s153, %s155
      %p159 = scmp.eq.s32.totalorder %s21, 0
      %p160 = por %p158, %p159
      %p161 = scmp.ne.s32.totalorder %s153, %s155
      %p162 = scmp.eq.s32.totalorder %s26, 7
      %p163 = por %p161, %p162
      %p164 = scmp.ne.s32.totalorder %s155, %s156
      %p165 = scmp.eq.s32.totalorder %s26, 0
      %p166 = por %p164, %p165
      %p167 = scmp.ne.s32.totalorder %s155, %s156
      %p168 = scmp.eq.s32.totalorder %s27, 7
      %p169 = por %p167, %p168
      %p171 = scmp.ne.s32.totalorder %s156, %s170
      %p172 = scmp.eq.s32.totalorder %s27, 0
      %p173 = por %p171, %p172
      %s175 = sadd.s32 %s174, 1
      %p178 = scmp.eq.s32.totalorder %s21, 7
      %p179 = scmp.ne.s32.totalorder %s174, %s176
      %p180 = scmp.eq.s32.totalorder %s21, 0
      %p181 = por %p179, %p180
      %p182 = scmp.ne.s32.totalorder %s174, %s176
      %p183 = scmp.eq.s32.totalorder %s26, 7
      %p184 = por %p182, %p183
      %p185 = scmp.ne.s32.totalorder %s176, %s177
      %p186 = scmp.eq.s32.totalorder %s26, 0
      %p187 = por %p185, %p186
      %p188 = scmp.ne.s32.totalorder %s176, %s177
      %p189 = scmp.eq.s32.totalorder %s27, 7
      %p190 = por %p188, %p189
      %p192 = scmp.ne.s32.totalorder %s177, %s191
      %p193 = scmp.eq.s32.totalorder %s27, 0
      %p194 = por %p192, %p193
      %s195 = ssub.s32 %s28, %s40
      %s196 = ssub.s32 %s29, %s36
      %s197 = sor.u32 %s195, %s196
      %p198 = scmp.eq.s32.totalorder %s197, 0
      %s200 = sadd.s32 %s199, 1
      %s201 = scalar_select %p198, %s199, %s200
      %p204 = pneg %p198
      %p205 = scmp.eq.s32.totalorder %s21, 7
      %p206 = por %p204, %p205
      %p207 = scmp.ne.s32.totalorder %s199, %s202
      %p208 = scmp.eq.s32.totalorder %s21, 0
      %p209 = por %p207, %p208
      %p210 = scmp.ne.s32.totalorder %s199, %s202
      %p211 = scmp.eq.s32.totalorder %s26, 7
      %p212 = por %p210, %p211
      %p213 = scmp.ne.s32.totalorder %s202, %s203
      %p214 = scmp.eq.s32.totalorder %s26, 0
      %p215 = por %p213, %p214
      %p216 = scmp.ne.s32.totalorder %s202, %s203
      %p217 = scmp.eq.s32.totalorder %s27, 7
      %p218 = por %p216, %p217
      %p220 = scmp.ne.s32.totalorder %s203, %s219
      %p221 = scmp.eq.s32.totalorder %s27, 0
      %p222 = por %p220, %p221
      %p223 = scmp.le.s32.totalorder 1, %s21
      %p224 = scmp.lt.s32.totalorder %s21, 9
      %p225 = pnand %p223, %p224
      %p226 = pneg %p225
      // Predicated region
      $region9: #{tpu_custom_call.1} parent=5 // pred_check
        _
      $region10: #{tpu_custom_call.1} parent=5 // pred_check_branch
        %228 = sbr.rel (%p225) target = $region12
      $region11: #{tpu_custom_call.1} parent=5 // pred_region
        %s229 = ssub.s32 %s21, 1
        // Predicated region
        $region13: #{tpu_custom_call.1} parent=11 // pred_check
          %p230 = pneg %p82
        $region14: #{tpu_custom_call.1} parent=11 // pred_check_branch
          %232 = sbr.rel (%p230) target = $region16
        $region15: #{tpu_custom_call.1} parent=11 // pred_region
          %s234 = ssub.s32 512, 512
          %235 = vsyncadd [#allocation6], %s234
          %s236 = sshll.u32 [#allocation5], 4
          %s237 = int_to_ptr.vmem [resolvable:$true] %s236
          %242 = dma.hbm_to_vmem [thread:$0]  %s1, 512, %s237, [#allocation6], 128, 128, 8
        $region16: #{tpu_custom_call.1} parent=11 // pred_fallthru
          _
        // Predicated region
        $region17: #{tpu_custom_call.1} parent=11 // pred_check
          %p243 = pneg %p103
        $region18: #{tpu_custom_call.1} parent=11 // pred_check_branch
          %245 = sbr.rel (%p243) target = $region20
        $region19: #{tpu_custom_call.1} parent=11 // pred_region
          _
        $region20: #{tpu_custom_call.1} parent=11 // pred_fallthru
          _
        // Predicated region
        $region21: #{tpu_custom_call.1} parent=11 // pred_check
          %p246 = pneg %p124
        $region22: #{tpu_custom_call.1} parent=11 // pred_check_branch
          %248 = sbr.rel (%p246) target = $region24
        $region23: #{tpu_custom_call.1} parent=11 // pred_region
          %s250 = ssub.s32 512, 512
          %251 = vsyncadd [#allocation6], %s250
          %s252 = sshll.u32 [#allocation7], 4
          %s253 = int_to_ptr.vmem [resolvable:$true] %s252
          %258 = dma.hbm_to_vmem [thread:$0]  %s3, 512, %s253, [#allocation6], 128, 128, 8
        $region24: #{tpu_custom_call.1} parent=11 // pred_fallthru
          _
        // Predicated region
        $region25: #{tpu_custom_call.1} parent=11 // pred_check
          %p259 = pneg %p145
        $region26: #{tpu_custom_call.1} parent=11 // pred_check_branch
          %261 = sbr.rel (%p259) target = $region28
        $region27: #{tpu_custom_call.1} parent=11 // pred_region
          _
        $region28: #{tpu_custom_call.1} parent=11 // pred_fallthru
          _
        // Predicated region
        $region29: #{tpu_custom_call.1} parent=11 // pred_check
          %p262 = pneg %p166
        $region30: #{tpu_custom_call.1} parent=11 // pred_check_branch
          %264 = sbr.rel (%p262) target = $region32
        $region31: #{tpu_custom_call.1} parent=11 // pred_region
          %s266 = ssub.s32 512, 512
          %267 = vsyncadd [#allocation9], %s266
          %s268 = sshll.u32 [#allocation8], 4
          %s269 = int_to_ptr.vmem [resolvable:$true] %s268
          %274 = dma.hbm_to_vmem [thread:$0]  %s5, 512, %s269, [#allocation9], 128, 128, 8
        $region32: #{tpu_custom_call.1} parent=11 // pred_fallthru
          _
        // Predicated region
        $region33: #{tpu_custom_call.1} parent=11 // pred_check
          %p275 = pneg %p187
        $region34: #{tpu_custom_call.1} parent=11 // pred_check_branch
          %277 = sbr.rel (%p275) target = $region36
        $region35: #{tpu_custom_call.1} parent=11 // pred_region
          _
        $region36: #{tpu_custom_call.1} parent=11 // pred_fallthru
          _
      $region12: #{tpu_custom_call.1} parent=5 // pred_fallthru
        _
      %p278 = scmp.lt.s32.totalorder %s21, 8
      // Predicated region
      $region37: #{tpu_custom_call.1} parent=5 // pred_check
        %p279 = pneg %p278
      $region38: #{tpu_custom_call.1} parent=5 // pred_check_branch
        %281 = sbr.rel (%p279) target = $region40
      $region39: #{tpu_custom_call.1} parent=5 // pred_region
        // Predicated region
        $region41: #{tpu_custom_call.1} parent=39 // pred_check
          %p282 = pneg %p55
        $region42: #{tpu_custom_call.1} parent=39 // pred_check_branch
          %284 = sbr.rel (%p282) target = $region44
        $region43: #{tpu_custom_call.1} parent=39 // pred_region
          %s285 = sand.u32 %s45, 1
          %s286 = scalar_lea.sflag [#allocation3], %s285
          %s287 = sand.u32 %s45, 1
          %s288 = smul.addr %s287, 16
          %s289 = scalar_lea.vmem [#allocation2], %s288
          %s291 = ssub.s32 256, 256
          %292 = vsyncadd %s286, %s291
          %s293 = smul.addr %s29, 2
          %s294 = smul.addr %s28, 8
          %s295 = sadd.s32 %s293, %s294
          %s296 = smul.addr %s295, 128
          %s297 = scalar_lea.hbm %s0, %s296
          %s298 = sshll.u32 %s289, 4
          %s299 = int_to_ptr.vmem [resolvable:$true] %s298
          %304 = dma.hbm_to_vmem [thread:$0]  %s297, 256, %s299, %s286, 128, 128, 8
        $region44: #{tpu_custom_call.1} parent=39 // pred_fallthru
          _
      $region40: #{tpu_custom_call.1} parent=5 // pred_fallthru
        _
      %p305 = scmp.le.s32.totalorder 1, %s21
      %p306 = scmp.lt.s32.totalorder %s21, 9
      %p307 = pnand %p305, %p306
      %p308 = pneg %p307
      // Predicated region
      $region45: #{tpu_custom_call.1} parent=5 // pred_check
        _
      $region46: #{tpu_custom_call.1} parent=5 // pred_check_branch
        %310 = sbr.rel (%p307) target = $region48
      $region47: #{tpu_custom_call.1} parent=5 // pred_region
        %s311 = ssub.s32 %s21, 1
        %s312 = sand.u32 %s48, 1
        %s313 = scalar_lea.sflag [#allocation3], %s312
        %s314 = sand.u32 %s48, 1
        %s315 = smul.addr %s314, 16
        %s316 = scalar_lea.vmem [#allocation2], %s315
        // Predicated region
        $region49: #{tpu_custom_call.1} parent=47 // pred_check
          %p317 = pneg %p61
        $region50: #{tpu_custom_call.1} parent=47 // pred_check_branch
          %319 = sbr.rel (%p317) target = $region52
        $region51: #{tpu_custom_call.1} parent=47 // pred_region
          %320 = dma.done %s313, 256
        $region52: #{tpu_custom_call.1} parent=47 // pred_fallthru
          _
        // Predicated region
        $region53: #{tpu_custom_call.1} parent=47 // pred_check
          %p321 = pneg %p82
        $region54: #{tpu_custom_call.1} parent=47 // pred_check_branch
          %323 = sbr.rel (%p321) target = $region56
        $region55: #{tpu_custom_call.1} parent=47 // pred_region
          %324 = dma.done [#allocation6], 512
        $region56: #{tpu_custom_call.1} parent=47 // pred_fallthru
          _
        // Predicated region
        $region57: #{tpu_custom_call.1} parent=47 // pred_check
          %p325 = pneg %p124
        $region58: #{tpu_custom_call.1} parent=47 // pred_check_branch
          %327 = sbr.rel (%p325) target = $region60
        $region59: #{tpu_custom_call.1} parent=47 // pred_region
          %328 = dma.done [#allocation6], 512
        $region60: #{tpu_custom_call.1} parent=47 // pred_fallthru
          _
        // Predicated region
        $region61: #{tpu_custom_call.1} parent=47 // pred_check
          %p329 = pneg %p166
        $region62: #{tpu_custom_call.1} parent=47 // pred_check_branch
          %331 = sbr.rel (%p329) target = $region64
        $region63: #{tpu_custom_call.1} parent=47 // pred_region
          %332 = dma.done [#allocation9], 512
        $region64: #{tpu_custom_call.1} parent=47 // pred_fallthru
          _
        %s333 = sand.u32 %s48, 1
        %s334 = scalar_lea.sflag [#allocation3], %s333
        %s335 = sand.u32 %s48, 1
        %s336 = smul.addr %s335, 16
        %s337 = scalar_lea.vmem [#allocation2], %s336
        %p338 = pneg %p61
        %p339 = pneg %p58
        %p340 = pneg %p82
        %p341 = pneg %p79
        %p342 = pneg %p103
        %p343 = pneg %p100
        %p344 = pneg %p124
        %p345 = pneg %p121
        %p346 = pneg %p145
        %p347 = pneg %p142
        %p348 = pneg %p166
        %p349 = pneg %p163
        %p350 = pneg %p187
        %p351 = pneg %p184
        %p352 = pneg %p215
        %p353 = pneg %p212
        %s354 = sand.u32 %s202, 1
        %s355 = scalar_lea.sflag [#allocation4], %s354
        %s356 = sand.u32 %s202, 1
        %s357 = smul.addr %s356, 16
        %s358 = scalar_lea.vmem [#allocation10], %s357
        %v359 = vld [vmem:[%s316] sm:$0xff]
        %v360 = vld [vmem:[%s316 + $0x8] sm:$0xff]
        %v361 = vld [vmem:[#allocation5] sm:$0xff]
        %v362 = vld [vmem:[#allocation5 + $0x8] sm:$0xff]
        %v363 = vld [vmem:[#allocation5 + $0x10] sm:$0xff]
        %v364 = vld [vmem:[#allocation5 + $0x18] sm:$0xff]
        %v365 = vld [vmem:[%s2] sm:$0x1]
        %v367 = vlaneseq
        %v368 = vshrl.u32 %v367, 7
        %v369 = vsub.s32 0, %v368
        %v370 = vrot.slane %v365, %v369
        %vm372 = vcmask 261120
        %v374 = vsel %vm372, %v359, 0
        %v377 = vsel %vm372, %v360, 0
        %379 = vmatprep.subr.mxu0 0.0
        %v380 = vand.u32 %v361, 4294901760
        %381 = vmatpush1.msra.mxu0 %v380
        %382 = vmatprep.subr.mxu0 0.0
        %v383 = vand.u32 %v362, 4294901760
        %384 = vmatpush1.msra.mxu0 %v383
        %385 = vmatprep.subr.mxu0 0.0
        %v386 = vand.u32 %v363, 4294901760
        %387 = vmatpush1.msra.mxu0 %v386
        %388 = vmatprep.subr.mxu0 0.0
        %v389 = vand.u32 %v364, 4294901760
        %390 = vmatpush1.msra.mxu0 %v389
        %391 = vmatprep.subr.mxu0 0.0
        %392 = vmatpush1.msra.mxu0 0.0
        %393 = vmatprep.subr.mxu0 0.0
        %394 = vmatpush1.msra.mxu0 0.0
        %395 = vmatprep.subr.mxu0 0.0
        %396 = vmatpush1.msra.mxu0 0.0
        %397 = vmatprep.subr.mxu0 0.0
        %398 = vmatpush1.msra.mxu0 0.0
        %399 = vmatprep.subr.mxu0 0.0
        %400 = vmatpush1.msra.mxu0 0.0
        %401 = vmatprep.subr.mxu0 0.0
        %402 = vmatpush1.msra.mxu0 0.0
        %403 = vmatprep.subr.mxu0 0.0
        %404 = vmatpush1.msra.mxu0 0.0
        %405 = vmatprep.subr.mxu0 0.0
        %406 = vmatpush1.msra.mxu0 0.0
        %407 = vmatprep.subr.mxu0 0.0
        %408 = vmatpush1.msra.mxu0 0.0
        %409 = vmatprep.subr.mxu0 0.0
        %410 = vmatpush1.msra.mxu0 0.0
        %411 = vmatprep.subr.mxu0 0.0
        %412 = vmatpush1.msra.mxu0 0.0
        %413 = vmatprep.subr.mxu0 0.0
        %414 = vmatpush1.msra.mxu0 0.0
        %415 = vmatprep.subr.mxu0 0.0
        %416 = vmatpush1.msra.mxu0 0.0
        %417 = vmatprep.subr.mxu0 0.0
        %418 = vmatpush1.msra.mxu0 0.0
        %419 = vmatprep.subr.mxu0 0.0
        %420 = vmatpush1.msra.mxu0 0.0
        %421 = vmatprep.subr.mxu0 0.0
        %422 = vmatpush1.msra.mxu0 0.0
        %423 = vmatprep.subr.mxu0 0.0
        %424 = vmatpush1.msra.mxu0 0.0
        %425 = vmatprep.subr.mxu0 0.0
        %426 = vmatpush1.msra.mxu0 0.0
        %427 = vmatprep.subr.mxu0 0.0
        %428 = vmatpush1.msra.mxu0 0.0
        %429 = vmatprep.subr.mxu0 0.0
        %430 = vmatpush1.msra.mxu0 0.0
        %431 = vmatprep.subr.mxu0 0.0
        %432 = vmatpush1.msra.mxu0 0.0
        %433 = vmatprep.subr.mxu0 0.0
        %434 = vmatpush1.msra.mxu0 0.0
        %435 = vmatprep.subr.mxu0 0.0
        %436 = vmatpush1.msra.mxu0 0.0
        %437 = vmatprep.subr.mxu0 0.0
        %438 = vmatpush1.msra.mxu0 0.0
        %439 = vmatprep.subr.mxu0 0.0
        %440 = vmatpush1.msra.mxu0 0.0
        %441 = vmatprep.subr.mxu0 0.0
        %442 = vmatpush1.msra.mxu0 0.0
        %443 = vmatprep.subr.mxu0 0.0
        %444 = vmatpush1.msra.mxu0 0.0
        %445 = vmatprep.subr.mxu0 0.0
        %446 = vmatpush1.msra.mxu0 0.0
        %447 = vmatprep.mubr.f32.mxu0 0.0
        %v448 = vand.u32 %v374, 4294901760
        %v449 = vsub.f32 %v374, %v448
        %v450 = vand.u32 %v449, 4294901760
        %v451 = vsub.f32 %v449, %v450
        %v452 = vand.u32 %v451, 4294901760
        %453 = vmatmul.mubr.f32.gmra.mrb[0].mxu0 %v452
        %v454 = vpop.f32.mrb[0].mxu0
        %v455 = vadd.f32 %v370, %v454
        %v456 = vpop.f32.mrb[0].mxu0
        %457 = vmatprep.mubr.f32.mxu0 0.0
        %v458 = vand.u32 %v377, 4294901760
        %v459 = vsub.f32 %v377, %v458
        %v460 = vand.u32 %v459, 4294901760
        %v461 = vsub.f32 %v459, %v460
        %v462 = vand.u32 %v461, 4294901760
        %463 = vmatmul.mubr.f32.gmra.mrb[0].mxu0 %v462
        %v464 = vpop.f32.mrb[0].mxu0
        %v465 = vadd.f32 %v370, %v464
        %v466 = vpop.f32.mrb[0].mxu0
        %467 = vdwg.mxu0
        %468 = vmatprep.subr.mxu0 0.0
        %v469 = vand.u32 %v361, 4294901760
        %v470 = vsub.f32 %v361, %v469
        %v471 = vand.u32 %v470, 4294901760
        %v472 = vsub.f32 %v470, %v471
        %v473 = vand.u32 %v472, 4294901760
        %474 = vmatpush1.msra.mxu0 %v473
        %475 = vmatprep.subr.mxu0 0.0
        %v476 = vand.u32 %v362, 4294901760
        %v477 = vsub.f32 %v362, %v476
        %v478 = vand.u32 %v477, 4294901760
        %v479 = vsub.f32 %v477, %v478
        %v480 = vand.u32 %v479, 4294901760
        %481 = vmatpush1.msra.mxu0 %v480
        %482 = vmatprep.subr.mxu0 0.0
        %v483 = vand.u32 %v363, 4294901760
        %v484 = vsub.f32 %v363, %v483
        %v485 = vand.u32 %v484, 4294901760
        %v486 = vsub.f32 %v484, %v485
        %v487 = vand.u32 %v486, 4294901760
        %488 = vmatpush1.msra.mxu0 %v487
        %489 = vmatprep.subr.mxu0 0.0
        %v490 = vand.u32 %v364, 4294901760
        %v491 = vsub.f32 %v364, %v490
        %v492 = vand.u32 %v491, 4294901760
        %v493 = vsub.f32 %v491, %v492
        %v494 = vand.u32 %v493, 4294901760
        %495 = vmatpush1.msra.mxu0 %v494
        %496 = vmatprep.subr.mxu0 0.0
        %497 = vmatpush1.msra.mxu0 0.0
        %498 = vmatprep.subr.mxu0 0.0
        %499 = vmatpush1.msra.mxu0 0.0
        %500 = vmatprep.subr.mxu0 0.0
        %501 = vmatpush1.msra.mxu0 0.0
        %502 = vmatprep.subr.mxu0 0.0
        %503 = vmatpush1.msra.mxu0 0.0
        %504 = vmatprep.subr.mxu0 0.0
        %505 = vmatpush1.msra.mxu0 0.0
        %506 = vmatprep.subr.mxu0 0.0
        %507 = vmatpush1.msra.mxu0 0.0
        %508 = vmatprep.subr.mxu0 0.0
        %509 = vmatpush1.msra.mxu0 0.0
        %510 = vmatprep.subr.mxu0 0.0
        %511 = vmatpush1.msra.mxu0 0.0
        %512 = vmatprep.subr.mxu0 0.0
        %513 = vmatpush1.msra.mxu0 0.0
        %514 = vmatprep.subr.mxu0 0.0
        %515 = vmatpush1.msra.mxu0 0.0
        %516 = vmatprep.subr.mxu0 0.0
        %517 = vmatpush1.msra.mxu0 0.0
        %518 = vmatprep.subr.mxu0 0.0
        %519 = vmatpush1.msra.mxu0 0.0
        %520 = vmatprep.subr.mxu0 0.0
        %521 = vmatpush1.msra.mxu0 0.0
        %522 = vmatprep.subr.mxu0 0.0
        %523 = vmatpush1.msra.mxu0 0.0
        %524 = vmatprep.subr.mxu0 0.0
        %525 = vmatpush1.msra.mxu0 0.0
        %526 = vmatprep.subr.mxu0 0.0
        %527 = vmatpush1.msra.mxu0 0.0
        %528 = vmatprep.subr.mxu0 0.0
        %529 = vmatpush1.msra.mxu0 0.0
        %530 = vmatprep.subr.mxu0 0.0
        %531 = vmatpush1.msra.mxu0 0.0
        %532 = vmatprep.subr.mxu0 0.0
        %533 = vmatpush1.msra.mxu0 0.0
        %534 = vmatprep.subr.mxu0 0.0
        %535 = vmatpush1.msra.mxu0 0.0
        %536 = vmatprep.subr.mxu0 0.0
        %537 = vmatpush1.msra.mxu0 0.0
        %538 = vmatprep.subr.mxu0 0.0
        %539 = vmatpush1.msra.mxu0 0.0
        %540 = vmatprep.subr.mxu0 0.0
        %541 = vmatpush1.msra.mxu0 0.0
        %542 = vmatprep.subr.mxu0 0.0
        %543 = vmatpush1.msra.mxu0 0.0
        %544 = vmatprep.subr.mxu0 0.0
        %545 = vmatpush1.msra.mxu0 0.0
        %546 = vmatprep.subr.mxu0 0.0
        %547 = vmatpush1.msra.mxu0 0.0
        %548 = vmatprep.subr.mxu0 0.0
        %549 = vmatpush1.msra.mxu0 0.0
        %550 = vmatprep.subr.mxu0 0.0
        %551 = vmatpush1.msra.mxu0 0.0
        %552 = vmatprep.mubr.f32.mxu0 0.0
        %v553 = vand.u32 %v374, 4294901760
        %554 = vmatmul.mubr.f32.gmra.mrb[0].mxu0 %v553
        %v555 = vpop.f32.mrb[0].mxu0
        %v556 = vadd.f32 %v455, %v555
        %v557 = vpop.f32.mrb[0].mxu0
        %558 = vmatprep.mubr.f32.mxu0 0.0
        %v559 = vand.u32 %v377, 4294901760
        %560 = vmatmul.mubr.f32.gmra.mrb[0].mxu0 %v559
        %v561 = vpop.f32.mrb[0].mxu0
        %v562 = vadd.f32 %v465, %v561
        %v563 = vpop.f32.mrb[0].mxu0
        %564 = vdwg.mxu0
        %565 = vmatprep.subr.mxu0 0.0
        %v566 = vand.u32 %v361, 4294901760
        %v567 = vsub.f32 %v361, %v566
        %568 = vmatpush1.msra.mxu0 %v567
        %569 = vmatprep.subr.mxu0 0.0
        %v570 = vand.u32 %v362, 4294901760
        %v571 = vsub.f32 %v362, %v570
        %572 = vmatpush1.msra.mxu0 %v571
        %573 = vmatprep.subr.mxu0 0.0
        %v574 = vand.u32 %v363, 4294901760
        %v575 = vsub.f32 %v363, %v574
        %576 = vmatpush1.msra.mxu0 %v575
        %577 = vmatprep.subr.mxu0 0.0
        %v578 = vand.u32 %v364, 4294901760
        %v579 = vsub.f32 %v364, %v578
        %580 = vmatpush1.msra.mxu0 %v579
        %581 = vmatprep.subr.mxu0 0.0
        %582 = vmatpush1.msra.mxu0 0.0
        %583 = vmatprep.subr.mxu0 0.0
        %584 = vmatpush1.msra.mxu0 0.0
        %585 = vmatprep.subr.mxu0 0.0
        %586 = vmatpush1.msra.mxu0 0.0
        %587 = vmatprep.subr.mxu0 0.0
        %588 = vmatpush1.msra.mxu0 0.0
        %589 = vmatprep.subr.mxu0 0.0
        %590 = vmatpush1.msra.mxu0 0.0
        %591 = vmatprep.subr.mxu0 0.0
        %592 = vmatpush1.msra.mxu0 0.0
        %593 = vmatprep.subr.mxu0 0.0
        %594 = vmatpush1.msra.mxu0 0.0
        %595 = vmatprep.subr.mxu0 0.0
        %596 = vmatpush1.msra.mxu0 0.0
        %597 = vmatprep.subr.mxu0 0.0
        %598 = vmatpush1.msra.mxu0 0.0
        %599 = vmatprep.subr.mxu0 0.0
        %600 = vmatpush1.msra.mxu0 0.0
        %601 = vmatprep.subr.mxu0 0.0
        %602 = vmatpush1.msra.mxu0 0.0
        %603 = vmatprep.subr.mxu0 0.0
        %604 = vmatpush1.msra.mxu0 0.0
        %605 = vmatprep.subr.mxu0 0.0
        %606 = vmatpush1.msra.mxu0 0.0
        %607 = vmatprep.subr.mxu0 0.0
        %608 = vmatpush1.msra.mxu0 0.0
        %609 = vmatprep.subr.mxu0 0.0
        %610 = vmatpush1.msra.mxu0 0.0
        %611 = vmatprep.subr.mxu0 0.0
        %612 = vmatpush1.msra.mxu0 0.0
        %613 = vmatprep.subr.mxu0 0.0
        %614 = vmatpush1.msra.mxu0 0.0
        %615 = vmatprep.subr.mxu0 0.0
        %616 = vmatpush1.msra.mxu0 0.0
        %617 = vmatprep.subr.mxu0 0.0
        %618 = vmatpush1.msra.mxu0 0.0
        %619 = vmatprep.subr.mxu0 0.0
        %620 = vmatpush1.msra.mxu0 0.0
        %621 = vmatprep.subr.mxu0 0.0
        %622 = vmatpush1.msra.mxu0 0.0
        %623 = vmatprep.subr.mxu0 0.0
        %624 = vmatpush1.msra.mxu0 0.0
        %625 = vmatprep.subr.mxu0 0.0
        %626 = vmatpush1.msra.mxu0 0.0
        %627 = vmatprep.subr.mxu0 0.0
        %628 = vmatpush1.msra.mxu0 0.0
        %629 = vmatprep.subr.mxu0 0.0
        %630 = vmatpush1.msra.mxu0 0.0
        %631 = vmatprep.subr.mxu0 0.0
        %632 = vmatpush1.msra.mxu0 0.0
        %633 = vmatprep.subr.mxu0 0.0
        %634 = vmatpush1.msra.mxu0 0.0
        %635 = vmatprep.subr.mxu0 0.0
        %636 = vmatpush1.msra.mxu0 0.0
        %637 = vmatprep.mubr.f32.mxu0 0.0
        %v638 = vand.u32 %v374, 4294901760
        %v639 = vsub.f32 %v374, %v638
        %640 = vmatmul.mubr.f32.gmra.mrb[0].mxu0 %v639
        %v641 = vpop.f32.mrb[0].mxu0
        %v642 = vadd.f32 %v556, %v641
        %v643 = vpop.f32.mrb[0].mxu0
        %644 = vmatprep.mubr.f32.mxu0 0.0
        %v645 = vand.u32 %v377, 4294901760
        %v646 = vsub.f32 %v377, %v645
        %647 = vmatmul.mubr.f32.gmra.mrb[0].mxu0 %v646
        %v648 = vpop.f32.mrb[0].mxu0
        %v649 = vadd.f32 %v562, %v648
        %v650 = vpop.f32.mrb[0].mxu0
        %651 = vdwg.mxu0
        %652 = vmatprep.subr.mxu0 0.0
        %v653 = vand.u32 %v361, 4294901760
        %654 = vmatpush1.msra.mxu0 %v653
        %655 = vmatprep.subr.mxu0 0.0
        %v656 = vand.u32 %v362, 4294901760
        %657 = vmatpush1.msra.mxu0 %v656
        %658 = vmatprep.subr.mxu0 0.0
        %v659 = vand.u32 %v363, 4294901760
        %660 = vmatpush1.msra.mxu0 %v659
        %661 = vmatprep.subr.mxu0 0.0
        %v662 = vand.u32 %v364, 4294901760
        %663 = vmatpush1.msra.mxu0 %v662
        %664 = vmatprep.subr.mxu0 0.0
        %665 = vmatpush1.msra.mxu0 0.0
        %666 = vmatprep.subr.mxu0 0.0
        %667 = vmatpush1.msra.mxu0 0.0
        %668 = vmatprep.subr.mxu0 0.0
        %669 = vmatpush1.msra.mxu0 0.0
        %670 = vmatprep.subr.mxu0 0.0
        %671 = vmatpush1.msra.mxu0 0.0
        %672 = vmatprep.subr.mxu0 0.0
        %673 = vmatpush1.msra.mxu0 0.0
        %674 = vmatprep.subr.mxu0 0.0
        %675 = vmatpush1.msra.mxu0 0.0
        %676 = vmatprep.subr.mxu0 0.0
        %677 = vmatpush1.msra.mxu0 0.0
        %678 = vmatprep.subr.mxu0 0.0
        %679 = vmatpush1.msra.mxu0 0.0
        %680 = vmatprep.subr.mxu0 0.0
        %681 = vmatpush1.msra.mxu0 0.0
        %682 = vmatprep.subr.mxu0 0.0
        %683 = vmatpush1.msra.mxu0 0.0
        %684 = vmatprep.subr.mxu0 0.0
        %685 = vmatpush1.msra.mxu0 0.0
        %686 = vmatprep.subr.mxu0 0.0
        %687 = vmatpush1.msra.mxu0 0.0
        %688 = vmatprep.subr.mxu0 0.0
        %689 = vmatpush1.msra.mxu0 0.0
        %690 = vmatprep.subr.mxu0 0.0
        %691 = vmatpush1.msra.mxu0 0.0
        %692 = vmatprep.subr.mxu0 0.0
        %693 = vmatpush1.msra.mxu0 0.0
        %694 = vmatprep.subr.mxu0 0.0
        %695 = vmatpush1.msra.mxu0 0.0
        %696 = vmatprep.subr.mxu0 0.0
        %697 = vmatpush1.msra.mxu0 0.0
        %698 = vmatprep.subr.mxu0 0.0
        %699 = vmatpush1.msra.mxu0 0.0
        %700 = vmatprep.subr.mxu0 0.0
        %701 = vmatpush1.msra.mxu0 0.0
        %702 = vmatprep.subr.mxu0 0.0
        %703 = vmatpush1.msra.mxu0 0.0
        %704 = vmatprep.subr.mxu0 0.0
        %705 = vmatpush1.msra.mxu0 0.0
        %706 = vmatprep.subr.mxu0 0.0
        %707 = vmatpush1.msra.mxu0 0.0
        %708 = vmatprep.subr.mxu0 0.0
        %709 = vmatpush1.msra.mxu0 0.0
        %710 = vmatprep.subr.mxu0 0.0
        %711 = vmatpush1.msra.mxu0 0.0
        %712 = vmatprep.subr.mxu0 0.0
        %713 = vmatpush1.msra.mxu0 0.0
        %714 = vmatprep.subr.mxu0 0.0
        %715 = vmatpush1.msra.mxu0 0.0
        %716 = vmatprep.subr.mxu0 0.0
        %717 = vmatpush1.msra.mxu0 0.0
        %718 = vmatprep.subr.mxu0 0.0
        %719 = vmatpush1.msra.mxu0 0.0
        %720 = vmatprep.mubr.f32.mxu0 0.0
        %v721 = vand.u32 %v374, 4294901760
        %v722 = vsub.f32 %v374, %v721
        %v723 = vand.u32 %v722, 4294901760
        %724 = vmatmul.mubr.f32.gmra.mrb[0].mxu0 %v723
        %v725 = vpop.f32.mrb[0].mxu0
        %v726 = vadd.f32 %v642, %v725
        %v727 = vpop.f32.mrb[0].mxu0
        %728 = vmatprep.mubr.f32.mxu0 0.0
        %v729 = vand.u32 %v377, 4294901760
        %v730 = vsub.f32 %v377, %v729
        %v731 = vand.u32 %v730, 4294901760
        %732 = vmatmul.mubr.f32.gmra.mrb[0].mxu0 %v731
        %v733 = vpop.f32.mrb[0].mxu0
        %v734 = vadd.f32 %v649, %v733
        %v735 = vpop.f32.mrb[0].mxu0
        %736 = vdwg.mxu0
        %737 = vmatprep.subr.mxu0 0.0
        %v738 = vand.u32 %v361, 4294901760
        %v739 = vsub.f32 %v361, %v738
        %v740 = vand.u32 %v739, 4294901760
        %741 = vmatpush1.msra.mxu0 %v740
        %742 = vmatprep.subr.mxu0 0.0
        %v743 = vand.u32 %v362, 4294901760
        %v744 = vsub.f32 %v362, %v743
        %v745 = vand.u32 %v744, 4294901760
        %746 = vmatpush1.msra.mxu0 %v745
        %747 = vmatprep.subr.mxu0 0.0
        %v748 = vand.u32 %v363, 4294901760
        %v749 = vsub.f32 %v363, %v748
        %v750 = vand.u32 %v749, 4294901760
        %751 = vmatpush1.msra.mxu0 %v750
        %752 = vmatprep.subr.mxu0 0.0
        %v753 = vand.u32 %v364, 4294901760
        %v754 = vsub.f32 %v364, %v753
        %v755 = vand.u32 %v754, 4294901760
        %756 = vmatpush1.msra.mxu0 %v755
        %757 = vmatprep.subr.mxu0 0.0
        %758 = vmatpush1.msra.mxu0 0.0
        %759 = vmatprep.subr.mxu0 0.0
        %760 = vmatpush1.msra.mxu0 0.0
        %761 = vmatprep.subr.mxu0 0.0
        %762 = vmatpush1.msra.mxu0 0.0
        %763 = vmatprep.subr.mxu0 0.0
        %764 = vmatpush1.msra.mxu0 0.0
        %765 = vmatprep.subr.mxu0 0.0
        %766 = vmatpush1.msra.mxu0 0.0
        %767 = vmatprep.subr.mxu0 0.0
        %768 = vmatpush1.msra.mxu0 0.0
        %769 = vmatprep.subr.mxu0 0.0
        %770 = vmatpush1.msra.mxu0 0.0
        %771 = vmatprep.subr.mxu0 0.0
        %772 = vmatpush1.msra.mxu0 0.0
        %773 = vmatprep.subr.mxu0 0.0
        %774 = vmatpush1.msra.mxu0 0.0
        %775 = vmatprep.subr.mxu0 0.0
        %776 = vmatpush1.msra.mxu0 0.0
        %777 = vmatprep.subr.mxu0 0.0
        %778 = vmatpush1.msra.mxu0 0.0
        %779 = vmatprep.subr.mxu0 0.0
        %780 = vmatpush1.msra.mxu0 0.0
        %781 = vmatprep.subr.mxu0 0.0
        %782 = vmatpush1.msra.mxu0 0.0
        %783 = vmatprep.subr.mxu0 0.0
        %784 = vmatpush1.msra.mxu0 0.0
        %785 = vmatprep.subr.mxu0 0.0
        %786 = vmatpush1.msra.mxu0 0.0
        %787 = vmatprep.subr.mxu0 0.0
        %788 = vmatpush1.msra.mxu0 0.0
        %789 = vmatprep.subr.mxu0 0.0
        %790 = vmatpush1.msra.mxu0 0.0
        %791 = vmatprep.subr.mxu0 0.0
        %792 = vmatpush1.msra.mxu0 0.0
        %793 = vmatprep.subr.mxu0 0.0
        %794 = vmatpush1.msra.mxu0 0.0
        %795 = vmatprep.subr.mxu0 0.0
        %796 = vmatpush1.msra.mxu0 0.0
        %797 = vmatprep.subr.mxu0 0.0
        %798 = vmatpush1.msra.mxu0 0.0
        %799 = vmatprep.subr.mxu0 0.0
        %800 = vmatpush1.msra.mxu0 0.0
        %801 = vmatprep.subr.mxu0 0.0
        %802 = vmatpush1.msra.mxu0 0.0
        %803 = vmatprep.subr.mxu0 0.0
        %804 = vmatpush1.msra.mxu0 0.0
        %805 = vmatprep.subr.mxu0 0.0
        %806 = vmatpush1.msra.mxu0 0.0
        %807 = vmatprep.subr.mxu0 0.0
        %808 = vmatpush1.msra.mxu0 0.0
        %809 = vmatprep.subr.mxu0 0.0
        %810 = vmatpush1.msra.mxu0 0.0
        %811 = vmatprep.subr.mxu0 0.0
        %812 = vmatpush1.msra.mxu0 0.0
        %813 = vmatprep.mubr.f32.mxu0 0.0
        %v814 = vand.u32 %v374, 4294901760
        %815 = vmatmul.mubr.f32.gmra.mrb[0].mxu0 %v814
        %v816 = vpop.f32.mrb[0].mxu0
        %v817 = vadd.f32 %v726, %v816
        %v818 = vpop.f32.mrb[0].mxu0
        %819 = vmatprep.mubr.f32.mxu0 0.0
        %v820 = vand.u32 %v377, 4294901760
        %821 = vmatmul.mubr.f32.gmra.mrb[0].mxu0 %v820
        %v822 = vpop.f32.mrb[0].mxu0
        %v823 = vadd.f32 %v734, %v822
        %v824 = vpop.f32.mrb[0].mxu0
        %825 = vdwg.mxu0
        %826 = vmatprep.subr.mxu0 0.0
        %v827 = vand.u32 %v361, 4294901760
        %828 = vmatpush1.msra.mxu0 %v827
        %829 = vmatprep.subr.mxu0 0.0
        %v830 = vand.u32 %v362, 4294901760
        %831 = vmatpush1.msra.mxu0 %v830
        %832 = vmatprep.subr.mxu0 0.0
        %v833 = vand.u32 %v363, 4294901760
        %834 = vmatpush1.msra.mxu0 %v833
        %835 = vmatprep.subr.mxu0 0.0
        %v836 = vand.u32 %v364, 4294901760
        %837 = vmatpush1.msra.mxu0 %v836
        %838 = vmatprep.subr.mxu0 0.0
        %839 = vmatpush1.msra.mxu0 0.0
        %840 = vmatprep.subr.mxu0 0.0
        %841 = vmatpush1.msra.mxu0 0.0
        %842 = vmatprep.subr.mxu0 0.0
        %843 = vmatpush1.msra.mxu0 0.0
        %844 = vmatprep.subr.mxu0 0.0
        %845 = vmatpush1.msra.mxu0 0.0
        %846 = vmatprep.subr.mxu0 0.0
        %847 = vmatpush1.msra.mxu0 0.0
        %848 = vmatprep.subr.mxu0 0.0
        %849 = vmatpush1.msra.mxu0 0.0
        %850 = vmatprep.subr.mxu0 0.0
        %851 = vmatpush1.msra.mxu0 0.0
        %852 = vmatprep.subr.mxu0 0.0
        %853 = vmatpush1.msra.mxu0 0.0
        %854 = vmatprep.subr.mxu0 0.0
        %855 = vmatpush1.msra.mxu0 0.0
        %856 = vmatprep.subr.mxu0 0.0
        %857 = vmatpush1.msra.mxu0 0.0
        %858 = vmatprep.subr.mxu0 0.0
        %859 = vmatpush1.msra.mxu0 0.0
        %860 = vmatprep.subr.mxu0 0.0
        %861 = vmatpush1.msra.mxu0 0.0
        %862 = vmatprep.subr.mxu0 0.0
        %863 = vmatpush1.msra.mxu0 0.0
        %864 = vmatprep.subr.mxu0 0.0
        %865 = vmatpush1.msra.mxu0 0.0
        %866 = vmatprep.subr.mxu0 0.0
        %867 = vmatpush1.msra.mxu0 0.0
        %868 = vmatprep.subr.mxu0 0.0
        %869 = vmatpush1.msra.mxu0 0.0
        %870 = vmatprep.subr.mxu0 0.0
        %871 = vmatpush1.msra.mxu0 0.0
        %872 = vmatprep.subr.mxu0 0.0
        %873 = vmatpush1.msra.mxu0 0.0
        %874 = vmatprep.subr.mxu0 0.0
        %875 = vmatpush1.msra.mxu0 0.0
        %876 = vmatprep.subr.mxu0 0.0
        %877 = vmatpush1.msra.mxu0 0.0
        %878 = vmatprep.subr.mxu0 0.0
        %879 = vmatpush1.msra.mxu0 0.0
        %880 = vmatprep.subr.mxu0 0.0
        %881 = vmatpush1.msra.mxu0 0.0
        %882 = vmatprep.subr.mxu0 0.0
        %883 = vmatpush1.msra.mxu0 0.0
        %884 = vmatprep.subr.mxu0 0.0
        %885 = vmatpush1.msra.mxu0 0.0
        %886 = vmatprep.subr.mxu0 0.0
        %887 = vmatpush1.msra.mxu0 0.0
        %888 = vmatprep.subr.mxu0 0.0
        %889 = vmatpush1.msra.mxu0 0.0
        %890 = vmatprep.subr.mxu0 0.0
        %891 = vmatpush1.msra.mxu0 0.0
        %892 = vmatprep.subr.mxu0 0.0
        %893 = vmatpush1.msra.mxu0 0.0
        %894 = vmatprep.mubr.f32.mxu0 0.0
        %v895 = vand.u32 %v374, 4294901760
        %896 = vmatmul.mubr.f32.gmra.mrb[0].mxu0 %v895
        %v897 = vpop.f32.mrb[0].mxu0
        %v898 = vadd.f32 %v817, %v897
        %v899 = vpop.f32.mrb[0].mxu0
        %900 = vmatprep.mubr.f32.mxu0 0.0
        %v901 = vand.u32 %v377, 4294901760
        %902 = vmatmul.mubr.f32.gmra.mrb[0].mxu0 %v901
        %v903 = vpop.f32.mrb[0].mxu0
        %v904 = vadd.f32 %v823, %v903
        %v905 = vpop.f32.mrb[0].mxu0
        %906 = vdwg.mxu0
        %v907 = vtanh.pop %v898
        %v908 = vtanh.pop %v904
        %v909 = vld [vmem:[#allocation7] sm:$0xff]
        %v910 = vld [vmem:[#allocation7 + $0x8] sm:$0xff]
        %v911 = vld [vmem:[#allocation7 + $0x10] sm:$0xff]
        %v912 = vld [vmem:[#allocation7 + $0x18] sm:$0xff]
        %v913 = vld [vmem:[%s4] sm:$0x1]
        %v915 = vlaneseq
        %v916 = vshrl.u32 %v915, 7
        %v917 = vsub.s32 0, %v916
        %v918 = vrot.slane %v913, %v917
        %v921 = vsel %vm372, %v907, 0
        %v924 = vsel %vm372, %v908, 0
        %926 = vmatprep.subr.mxu0 0.0
        %v927 = vand.u32 %v909, 4294901760
        %928 = vmatpush1.msra.mxu0 %v927
        %929 = vmatprep.subr.mxu0 0.0
        %v930 = vand.u32 %v910, 4294901760
        %931 = vmatpush1.msra.mxu0 %v930
        %932 = vmatprep.subr.mxu0 0.0
        %v933 = vand.u32 %v911, 4294901760
        %934 = vmatpush1.msra.mxu0 %v933
        %935 = vmatprep.subr.mxu0 0.0
        %v936 = vand.u32 %v912, 4294901760
        %937 = vmatpush1.msra.mxu0 %v936
        %938 = vmatprep.subr.mxu0 0.0
        %939 = vmatpush1.msra.mxu0 0.0
        %940 = vmatprep.subr.mxu0 0.0
        %941 = vmatpush1.msra.mxu0 0.0
        %942 = vmatprep.subr.mxu0 0.0
        %943 = vmatpush1.msra.mxu0 0.0
        %944 = vmatprep.subr.mxu0 0.0
        %945 = vmatpush1.msra.mxu0 0.0
        %946 = vmatprep.subr.mxu0 0.0
        %947 = vmatpush1.msra.mxu0 0.0
        %948 = vmatprep.subr.mxu0 0.0
        %949 = vmatpush1.msra.mxu0 0.0
        %950 = vmatprep.subr.mxu0 0.0
        %951 = vmatpush1.msra.mxu0 0.0
        %952 = vmatprep.subr.mxu0 0.0
        %953 = vmatpush1.msra.mxu0 0.0
        %954 = vmatprep.subr.mxu0 0.0
        %955 = vmatpush1.msra.mxu0 0.0
        %956 = vmatprep.subr.mxu0 0.0
        %957 = vmatpush1.msra.mxu0 0.0
        %958 = vmatprep.subr.mxu0 0.0
        %959 = vmatpush1.msra.mxu0 0.0
        %960 = vmatprep.subr.mxu0 0.0
        %961 = vmatpush1.msra.mxu0 0.0
        %962 = vmatprep.subr.mxu0 0.0
        %963 = vmatpush1.msra.mxu0 0.0
        %964 = vmatprep.subr.mxu0 0.0
        %965 = vmatpush1.msra.mxu0 0.0
        %966 = vmatprep.subr.mxu0 0.0
        %967 = vmatpush1.msra.mxu0 0.0
        %968 = vmatprep.subr.mxu0 0.0
        %969 = vmatpush1.msra.mxu0 0.0
        %970 = vmatprep.subr.mxu0 0.0
        %971 = vmatpush1.msra.mxu0 0.0
        %972 = vmatprep.subr.mxu0 0.0
        %973 = vmatpush1.msra.mxu0 0.0
        %974 = vmatprep.subr.mxu0 0.0
        %975 = vmatpush1.msra.mxu0 0.0
        %976 = vmatprep.subr.mxu0 0.0
        %977 = vmatpush1.msra.mxu0 0.0
        %978 = vmatprep.subr.mxu0 0.0
        %979 = vmatpush1.msra.mxu0 0.0
        %980 = vmatprep.subr.mxu0 0.0
        %981 = vmatpush1.msra.mxu0 0.0
        %982 = vmatprep.subr.mxu0 0.0
        %983 = vmatpush1.msra.mxu0 0.0
        %984 = vmatprep.subr.mxu0 0.0
        %985 = vmatpush1.msra.mxu0 0.0
        %986 = vmatprep.subr.mxu0 0.0
        %987 = vmatpush1.msra.mxu0 0.0
        %988 = vmatprep.subr.mxu0 0.0
        %989 = vmatpush1.msra.mxu0 0.0
        %990 = vmatprep.subr.mxu0 0.0
        %991 = vmatpush1.msra.mxu0 0.0
        %992 = vmatprep.subr.mxu0 0.0
        %993 = vmatpush1.msra.mxu0 0.0
        %994 = vmatprep.mubr.f32.mxu0 0.0
        %v995 = vand.u32 %v921, 4294901760
        %v996 = vsub.f32 %v921, %v995
        %v997 = vand.u32 %v996, 4294901760
        %v998 = vsub.f32 %v996, %v997
        %v999 = vand.u32 %v998, 4294901760
        %1000 = vmatmul.mubr.f32.gmra.mrb[0].mxu0 %v999
        %v1001 = vpop.f32.mrb[0].mxu0
        %v1002 = vadd.f32 %v918, %v1001
        %v1003 = vpop.f32.mrb[0].mxu0
        %1004 = vmatprep.mubr.f32.mxu0 0.0
        %v1005 = vand.u32 %v924, 4294901760
        %v1006 = vsub.f32 %v924, %v1005
        %v1007 = vand.u32 %v1006, 4294901760
        %v1008 = vsub.f32 %v1006, %v1007
        %v1009 = vand.u32 %v1008, 4294901760
        %1010 = vmatmul.mubr.f32.gmra.mrb[0].mxu0 %v1009
        %v1011 = vpop.f32.mrb[0].mxu0
        %v1012 = vadd.f32 %v918, %v1011
        %v1013 = vpop.f32.mrb[0].mxu0
        %1014 = vdwg.mxu0
        %1015 = vmatprep.subr.mxu0 0.0
        %v1016 = vand.u32 %v909, 4294901760
        %v1017 = vsub.f32 %v909, %v1016
        %v1018 = vand.u32 %v1017, 4294901760
        %v1019 = vsub.f32 %v1017, %v1018
        %v1020 = vand.u32 %v1019, 4294901760
        %1021 = vmatpush1.msra.mxu0 %v1020
        %1022 = vmatprep.subr.mxu0 0.0
        %v1023 = vand.u32 %v910, 4294901760
        %v1024 = vsub.f32 %v910, %v1023
        %v1025 = vand.u32 %v1024, 4294901760
        %v1026 = vsub.f32 %v1024, %v1025
        %v1027 = vand.u32 %v1026, 4294901760
        %1028 = vmatpush1.msra.mxu0 %v1027
        %1029 = vmatprep.subr.mxu0 0.0
        %v1030 = vand.u32 %v911, 4294901760
        %v1031 = vsub.f32 %v911, %v1030
        %v1032 = vand.u32 %v1031, 4294901760
        %v1033 = vsub.f32 %v1031, %v1032
        %v1034 = vand.u32 %v1033, 4294901760
        %1035 = vmatpush1.msra.mxu0 %v1034
        %1036 = vmatprep.subr.mxu0 0.0
        %v1037 = vand.u32 %v912, 4294901760
        %v1038 = vsub.f32 %v912, %v1037
        %v1039 = vand.u32 %v1038, 4294901760
        %v1040 = vsub.f32 %v1038, %v1039
        %v1041 = vand.u32 %v1040, 4294901760
        %1042 = vmatpush1.msra.mxu0 %v1041
        %1043 = vmatprep.subr.mxu0 0.0
        %1044 = vmatpush1.msra.mxu0 0.0
        %1045 = vmatprep.subr.mxu0 0.0
        %1046 = vmatpush1.msra.mxu0 0.0
        %1047 = vmatprep.subr.mxu0 0.0
        %1048 = vmatpush1.msra.mxu0 0.0
        %1049 = vmatprep.subr.mxu0 0.0
        %1050 = vmatpush1.msra.mxu0 0.0
        %1051 = vmatprep.subr.mxu0 0.0
        %1052 = vmatpush1.msra.mxu0 0.0
        %1053 = vmatprep.subr.mxu0 0.0
        %1054 = vmatpush1.msra.mxu0 0.0
        %1055 = vmatprep.subr.mxu0 0.0
        %1056 = vmatpush1.msra.mxu0 0.0
        %1057 = vmatprep.subr.mxu0 0.0
        %1058 = vmatpush1.msra.mxu0 0.0
        %1059 = vmatprep.subr.mxu0 0.0
        %1060 = vmatpush1.msra.mxu0 0.0
        %1061 = vmatprep.subr.mxu0 0.0
        %1062 = vmatpush1.msra.mxu0 0.0
        %1063 = vmatprep.subr.mxu0 0.0
        %1064 = vmatpush1.msra.mxu0 0.0
        %1065 = vmatprep.subr.mxu0 0.0
        %1066 = vmatpush1.msra.mxu0 0.0
        %1067 = vmatprep.subr.mxu0 0.0
        %1068 = vmatpush1.msra.mxu0 0.0
        %1069 = vmatprep.subr.mxu0 0.0
        %1070 = vmatpush1.msra.mxu0 0.0
        %1071 = vmatprep.subr.mxu0 0.0
        %1072 = vmatpush1.msra.mxu0 0.0
        %1073 = vmatprep.subr.mxu0 0.0
        %1074 = vmatpush1.msra.mxu0 0.0
        %1075 = vmatprep.subr.mxu0 0.0
        %1076 = vmatpush1.msra.mxu0 0.0
        %1077 = vmatprep.subr.mxu0 0.0
        %1078 = vmatpush1.msra.mxu0 0.0
        %1079 = vmatprep.subr.mxu0 0.0
        %1080 = vmatpush1.msra.mxu0 0.0
        %1081 = vmatprep.subr.mxu0 0.0
        %1082 = vmatpush1.msra.mxu0 0.0
        %1083 = vmatprep.subr.mxu0 0.0
        %1084 = vmatpush1.msra.mxu0 0.0
        %1085 = vmatprep.subr.mxu0 0.0
        %1086 = vmatpush1.msra.mxu0 0.0
        %1087 = vmatprep.subr.mxu0 0.0
        %1088 = vmatpush1.msra.mxu0 0.0
        %1089 = vmatprep.subr.mxu0 0.0
        %1090 = vmatpush1.msra.mxu0 0.0
        %1091 = vmatprep.subr.mxu0 0.0
        %1092 = vmatpush1.msra.mxu0 0.0
        %1093 = vmatprep.subr.mxu0 0.0
        %1094 = vmatpush1.msra.mxu0 0.0
        %1095 = vmatprep.subr.mxu0 0.0
        %1096 = vmatpush1.msra.mxu0 0.0
        %1097 = vmatprep.subr.mxu0 0.0
        %1098 = vmatpush1.msra.mxu0 0.0
        %1099 = vmatprep.mubr.f32.mxu0 0.0
        %v1100 = vand.u32 %v921, 4294901760
        %1101 = vmatmul.mubr.f32.gmra.mrb[0].mxu0 %v1100
        %v1102 = vpop.f32.mrb[0].mxu0
        %v1103 = vadd.f32 %v1002, %v1102
        %v1104 = vpop.f32.mrb[0].mxu0
        %1105 = vmatprep.mubr.f32.mxu0 0.0
        %v1106 = vand.u32 %v924, 4294901760
        %1107 = vmatmul.mubr.f32.gmra.mrb[0].mxu0 %v1106
        %v1108 = vpop.f32.mrb[0].mxu0
        %v1109 = vadd.f32 %v1012, %v1108
        %v1110 = vpop.f32.mrb[0].mxu0
        %1111 = vdwg.mxu0
        %1112 = vmatprep.subr.mxu0 0.0
        %v1113 = vand.u32 %v909, 4294901760
        %v1114 = vsub.f32 %v909, %v1113
        %1115 = vmatpush1.msra.mxu0 %v1114
        %1116 = vmatprep.subr.mxu0 0.0
        %v1117 = vand.u32 %v910, 4294901760
        %v1118 = vsub.f32 %v910, %v1117
        %1119 = vmatpush1.msra.mxu0 %v1118
        %1120 = vmatprep.subr.mxu0 0.0
        %v1121 = vand.u32 %v911, 4294901760
        %v1122 = vsub.f32 %v911, %v1121
        %1123 = vmatpush1.msra.mxu0 %v1122
        %1124 = vmatprep.subr.mxu0 0.0
        %v1125 = vand.u32 %v912, 4294901760
        %v1126 = vsub.f32 %v912, %v1125
        %1127 = vmatpush1.msra.mxu0 %v1126
        %1128 = vmatprep.subr.mxu0 0.0
        %1129 = vmatpush1.msra.mxu0 0.0
        %1130 = vmatprep.subr.mxu0 0.0
        %1131 = vmatpush1.msra.mxu0 0.0
        %1132 = vmatprep.subr.mxu0 0.0
        %1133 = vmatpush1.msra.mxu0 0.0
        %1134 = vmatprep.subr.mxu0 0.0
        %1135 = vmatpush1.msra.mxu0 0.0
        %1136 = vmatprep.subr.mxu0 0.0
        %1137 = vmatpush1.msra.mxu0 0.0
        %1138 = vmatprep.subr.mxu0 0.0
        %1139 = vmatpush1.msra.mxu0 0.0
        %1140 = vmatprep.subr.mxu0 0.0
        %1141 = vmatpush1.msra.mxu0 0.0
        %1142 = vmatprep.subr.mxu0 0.0
        %1143 = vmatpush1.msra.mxu0 0.0
        %1144 = vmatprep.subr.mxu0 0.0
        %1145 = vmatpush1.msra.mxu0 0.0
        %1146 = vmatprep.subr.mxu0 0.0
        %1147 = vmatpush1.msra.mxu0 0.0
        %1148 = vmatprep.subr.mxu0 0.0
        %1149 = vmatpush1.msra.mxu0 0.0
        %1150 = vmatprep.subr.mxu0 0.0
        %1151 = vmatpush1.msra.mxu0 0.0
        %1152 = vmatprep.subr.mxu0 0.0
        %1153 = vmatpush1.msra.mxu0 0.0
        %1154 = vmatprep.subr.mxu0 0.0
        %1155 = vmatpush1.msra.mxu0 0.0
        %1156 = vmatprep.subr.mxu0 0.0
        %1157 = vmatpush1.msra.mxu0 0.0
        %1158 = vmatprep.subr.mxu0 0.0
        %1159 = vmatpush1.msra.mxu0 0.0
        %1160 = vmatprep.subr.mxu0 0.0
        %1161 = vmatpush1.msra.mxu0 0.0
        %1162 = vmatprep.subr.mxu0 0.0
        %1163 = vmatpush1.msra.mxu0 0.0
        %1164 = vmatprep.subr.mxu0 0.0
        %1165 = vmatpush1.msra.mxu0 0.0
        %1166 = vmatprep.subr.mxu0 0.0
        %1167 = vmatpush1.msra.mxu0 0.0
        %1168 = vmatprep.subr.mxu0 0.0
        %1169 = vmatpush1.msra.mxu0 0.0
        %1170 = vmatprep.subr.mxu0 0.0
        %1171 = vmatpush1.msra.mxu0 0.0
        %1172 = vmatprep.subr.mxu0 0.0
        %1173 = vmatpush1.msra.mxu0 0.0
        %1174 = vmatprep.subr.mxu0 0.0
        %1175 = vmatpush1.msra.mxu0 0.0
        %1176 = vmatprep.subr.mxu0 0.0
        %1177 = vmatpush1.msra.mxu0 0.0
        %1178 = vmatprep.subr.mxu0 0.0
        %1179 = vmatpush1.msra.mxu0 0.0
        %1180 = vmatprep.subr.mxu0 0.0
        %1181 = vmatpush1.msra.mxu0 0.0
        %1182 = vmatprep.subr.mxu0 0.0
        %1183 = vmatpush1.msra.mxu0 0.0
        %1184 = vmatprep.mubr.f32.mxu0 0.0
        %v1185 = vand.u32 %v921, 4294901760
        %v1186 = vsub.f32 %v921, %v1185
        %1187 = vmatmul.mubr.f32.gmra.mrb[0].mxu0 %v1186
        %v1188 = vpop.f32.mrb[0].mxu0
        %v1189 = vadd.f32 %v1103, %v1188
        %v1190 = vpop.f32.mrb[0].mxu0
        %1191 = vmatprep.mubr.f32.mxu0 0.0
        %v1192 = vand.u32 %v924, 4294901760
        %v1193 = vsub.f32 %v924, %v1192
        %1194 = vmatmul.mubr.f32.gmra.mrb[0].mxu0 %v1193
        %v1195 = vpop.f32.mrb[0].mxu0
        %v1196 = vadd.f32 %v1109, %v1195
        %v1197 = vpop.f32.mrb[0].mxu0
        %1198 = vdwg.mxu0
        %1199 = vmatprep.subr.mxu0 0.0
        %v1200 = vand.u32 %v909, 4294901760
        %1201 = vmatpush1.msra.mxu0 %v1200
        %1202 = vmatprep.subr.mxu0 0.0
        %v1203 = vand.u32 %v910, 4294901760
        %1204 = vmatpush1.msra.mxu0 %v1203
        %1205 = vmatprep.subr.mxu0 0.0
        %v1206 = vand.u32 %v911, 4294901760
        %1207 = vmatpush1.msra.mxu0 %v1206
        %1208 = vmatprep.subr.mxu0 0.0
        %v1209 = vand.u32 %v912, 4294901760
        %1210 = vmatpush1.msra.mxu0 %v1209
        %1211 = vmatprep.subr.mxu0 0.0
        %1212 = vmatpush1.msra.mxu0 0.0
        %1213 = vmatprep.subr.mxu0 0.0
        %1214 = vmatpush1.msra.mxu0 0.0
        %1215 = vmatprep.subr.mxu0 0.0
        %1216 = vmatpush1.msra.mxu0 0.0
        %1217 = vmatprep.subr.mxu0 0.0
        %1218 = vmatpush1.msra.mxu0 0.0
        %1219 = vmatprep.subr.mxu0 0.0
        %1220 = vmatpush1.msra.mxu0 0.0
        %1221 = vmatprep.subr.mxu0 0.0
        %1222 = vmatpush1.msra.mxu0 0.0
        %1223 = vmatprep.subr.mxu0 0.0
        %1224 = vmatpush1.msra.mxu0 0.0
        %1225 = vmatprep.subr.mxu0 0.0
        %1226 = vmatpush1.msra.mxu0 0.0
        %1227 = vmatprep.subr.mxu0 0.0
        %1228 = vmatpush1.msra.mxu0 0.0
        %1229 = vmatprep.subr.mxu0 0.0
        %1230 = vmatpush1.msra.mxu0 0.0
        %1231 = vmatprep.subr.mxu0 0.0
        %1232 = vmatpush1.msra.mxu0 0.0
        %1233 = vmatprep.subr.mxu0 0.0
        %1234 = vmatpush1.msra.mxu0 0.0
        %1235 = vmatprep.subr.mxu0 0.0
        %1236 = vmatpush1.msra.mxu0 0.0
        %1237 = vmatprep.subr.mxu0 0.0
        %1238 = vmatpush1.msra.mxu0 0.0
        %1239 = vmatprep.subr.mxu0 0.0
        %1240 = vmatpush1.msra.mxu0 0.0
        %1241 = vmatprep.subr.mxu0 0.0
        %1242 = vmatpush1.msra.mxu0 0.0
        %1243 = vmatprep.subr.mxu0 0.0
        %1244 = vmatpush1.msra.mxu0 0.0
        %1245 = vmatprep.subr.mxu0 0.0
        %1246 = vmatpush1.msra.mxu0 0.0
        %1247 = vmatprep.subr.mxu0 0.0
        %1248 = vmatpush1.msra.mxu0 0.0
        %1249 = vmatprep.subr.mxu0 0.0
        %1250 = vmatpush1.msra.mxu0 0.0
        %1251 = vmatprep.subr.mxu0 0.0
        %1252 = vmatpush1.msra.mxu0 0.0
        %1253 = vmatprep.subr.mxu0 0.0
        %1254 = vmatpush1.msra.mxu0 0.0
        %1255 = vmatprep.subr.mxu0 0.0
        %1256 = vmatpush1.msra.mxu0 0.0
        %1257 = vmatprep.subr.mxu0 0.0
        %1258 = vmatpush1.msra.mxu0 0.0
        %1259 = vmatprep.subr.mxu0 0.0
        %1260 = vmatpush1.msra.mxu0 0.0
        %1261 = vmatprep.subr.mxu0 0.0
        %1262 = vmatpush1.msra.mxu0 0.0
        %1263 = vmatprep.subr.mxu0 0.0
        %1264 = vmatpush1.msra.mxu0 0.0
        %1265 = vmatprep.subr.mxu0 0.0
        %1266 = vmatpush1.msra.mxu0 0.0
        %1267 = vmatprep.mubr.f32.mxu0 0.0
        %v1268 = vand.u32 %v921, 4294901760
        %v1269 = vsub.f32 %v921, %v1268
        %v1270 = vand.u32 %v1269, 4294901760
        %1271 = vmatmul.mubr.f32.gmra.mrb[0].mxu0 %v1270
        %v1272 = vpop.f32.mrb[0].mxu0
        %v1273 = vadd.f32 %v1189, %v1272
        %v1274 = vpop.f32.mrb[0].mxu0
        %1275 = vmatprep.mubr.f32.mxu0 0.0
        %v1276 = vand.u32 %v924, 4294901760
        %v1277 = vsub.f32 %v924, %v1276
        %v1278 = vand.u32 %v1277, 4294901760
        %1279 = vmatmul.mubr.f32.gmra.mrb[0].mxu0 %v1278
        %v1280 = vpop.f32.mrb[0].mxu0
        %v1281 = vadd.f32 %v1196, %v1280
        %v1282 = vpop.f32.mrb[0].mxu0
        %1283 = vdwg.mxu0
        %1284 = vmatprep.subr.mxu0 0.0
        %v1285 = vand.u32 %v909, 4294901760
        %v1286 = vsub.f32 %v909, %v1285
        %v1287 = vand.u32 %v1286, 4294901760
        %1288 = vmatpush1.msra.mxu0 %v1287
        %1289 = vmatprep.subr.mxu0 0.0
        %v1290 = vand.u32 %v910, 4294901760
        %v1291 = vsub.f32 %v910, %v1290
        %v1292 = vand.u32 %v1291, 4294901760
        %1293 = vmatpush1.msra.mxu0 %v1292
        %1294 = vmatprep.subr.mxu0 0.0
        %v1295 = vand.u32 %v911, 4294901760
        %v1296 = vsub.f32 %v911, %v1295
        %v1297 = vand.u32 %v1296, 4294901760
        %1298 = vmatpush1.msra.mxu0 %v1297
        %1299 = vmatprep.subr.mxu0 0.0
        %v1300 = vand.u32 %v912, 4294901760
        %v1301 = vsub.f32 %v912, %v1300
        %v1302 = vand.u32 %v1301, 4294901760
        %1303 = vmatpush1.msra.mxu0 %v1302
        %1304 = vmatprep.subr.mxu0 0.0
        %1305 = vmatpush1.msra.mxu0 0.0
        %1306 = vmatprep.subr.mxu0 0.0
        %1307 = vmatpush1.msra.mxu0 0.0
        %1308 = vmatprep.subr.mxu0 0.0
        %1309 = vmatpush1.msra.mxu0 0.0
        %1310 = vmatprep.subr.mxu0 0.0
        %1311 = vmatpush1.msra.mxu0 0.0
        %1312 = vmatprep.subr.mxu0 0.0
        %1313 = vmatpush1.msra.mxu0 0.0
        %1314 = vmatprep.subr.mxu0 0.0
        %1315 = vmatpush1.msra.mxu0 0.0
        %1316 = vmatprep.subr.mxu0 0.0
        %1317 = vmatpush1.msra.mxu0 0.0
        %1318 = vmatprep.subr.mxu0 0.0
        %1319 = vmatpush1.msra.mxu0 0.0
        %1320 = vmatprep.subr.mxu0 0.0
        %1321 = vmatpush1.msra.mxu0 0.0
        %1322 = vmatprep.subr.mxu0 0.0
        %1323 = vmatpush1.msra.mxu0 0.0
        %1324 = vmatprep.subr.mxu0 0.0
        %1325 = vmatpush1.msra.mxu0 0.0
        %1326 = vmatprep.subr.mxu0 0.0
        %1327 = vmatpush1.msra.mxu0 0.0
        %1328 = vmatprep.subr.mxu0 0.0
        %1329 = vmatpush1.msra.mxu0 0.0
        %1330 = vmatprep.subr.mxu0 0.0
        %1331 = vmatpush1.msra.mxu0 0.0
        %1332 = vmatprep.subr.mxu0 0.0
        %1333 = vmatpush1.msra.mxu0 0.0
        %1334 = vmatprep.subr.mxu0 0.0
        %1335 = vmatpush1.msra.mxu0 0.0
        %1336 = vmatprep.subr.mxu0 0.0
        %1337 = vmatpush1.msra.mxu0 0.0
        %1338 = vmatprep.subr.mxu0 0.0
        %1339 = vmatpush1.msra.mxu0 0.0
        %1340 = vmatprep.subr.mxu0 0.0
        %1341 = vmatpush1.msra.mxu0 0.0
        %1342 = vmatprep.subr.mxu0 0.0
        %1343 = vmatpush1.msra.mxu0 0.0
        %1344 = vmatprep.subr.mxu0 0.0
        %1345 = vmatpush1.msra.mxu0 0.0
        %1346 = vmatprep.subr.mxu0 0.0
        %1347 = vmatpush1.msra.mxu0 0.0
        %1348 = vmatprep.subr.mxu0 0.0
        %1349 = vmatpush1.msra.mxu0 0.0
        %1350 = vmatprep.subr.mxu0 0.0
        %1351 = vmatpush1.msra.mxu0 0.0
        %1352 = vmatprep.subr.mxu0 0.0
        %1353 = vmatpush1.msra.mxu0 0.0
        %1354 = vmatprep.subr.mxu0 0.0
        %1355 = vmatpush1.msra.mxu0 0.0
        %1356 = vmatprep.subr.mxu0 0.0
        %1357 = vmatpush1.msra.mxu0 0.0
        %1358 = vmatprep.subr.mxu0 0.0
        %1359 = vmatpush1.msra.mxu0 0.0
        %1360 = vmatprep.mubr.f32.mxu0 0.0
        %v1361 = vand.u32 %v921, 4294901760
        %1362 = vmatmul.mubr.f32.gmra.mrb[0].mxu0 %v1361
        %v1363 = vpop.f32.mrb[0].mxu0
        %v1364 = vadd.f32 %v1273, %v1363
        %v1365 = vpop.f32.mrb[0].mxu0
        %1366 = vmatprep.mubr.f32.mxu0 0.0
        %v1367 = vand.u32 %v924, 4294901760
        %1368 = vmatmul.mubr.f32.gmra.mrb[0].mxu0 %v1367
        %v1369 = vpop.f32.mrb[0].mxu0
        %v1370 = vadd.f32 %v1281, %v1369
        %v1371 = vpop.f32.mrb[0].mxu0
        %1372 = vdwg.mxu0
        %1373 = vmatprep.subr.mxu0 0.0
        %v1374 = vand.u32 %v909, 4294901760
        %1375 = vmatpush1.msra.mxu0 %v1374
        %1376 = vmatprep.subr.mxu0 0.0
        %v1377 = vand.u32 %v910, 4294901760
        %1378 = vmatpush1.msra.mxu0 %v1377
        %1379 = vmatprep.subr.mxu0 0.0
        %v1380 = vand.u32 %v911, 4294901760
        %1381 = vmatpush1.msra.mxu0 %v1380
        %1382 = vmatprep.subr.mxu0 0.0
        %v1383 = vand.u32 %v912, 4294901760
        %1384 = vmatpush1.msra.mxu0 %v1383
        %1385 = vmatprep.subr.mxu0 0.0
        %1386 = vmatpush1.msra.mxu0 0.0
        %1387 = vmatprep.subr.mxu0 0.0
        %1388 = vmatpush1.msra.mxu0 0.0
        %1389 = vmatprep.subr.mxu0 0.0
        %1390 = vmatpush1.msra.mxu0 0.0
        %1391 = vmatprep.subr.mxu0 0.0
        %1392 = vmatpush1.msra.mxu0 0.0
        %1393 = vmatprep.subr.mxu0 0.0
        %1394 = vmatpush1.msra.mxu0 0.0
        %1395 = vmatprep.subr.mxu0 0.0
        %1396 = vmatpush1.msra.mxu0 0.0
        %1397 = vmatprep.subr.mxu0 0.0
        %1398 = vmatpush1.msra.mxu0 0.0
        %1399 = vmatprep.subr.mxu0 0.0
        %1400 = vmatpush1.msra.mxu0 0.0
        %1401 = vmatprep.subr.mxu0 0.0
        %1402 = vmatpush1.msra.mxu0 0.0
        %1403 = vmatprep.subr.mxu0 0.0
        %1404 = vmatpush1.msra.mxu0 0.0
        %1405 = vmatprep.subr.mxu0 0.0
        %1406 = vmatpush1.msra.mxu0 0.0
        %1407 = vmatprep.subr.mxu0 0.0
        %1408 = vmatpush1.msra.mxu0 0.0
        %1409 = vmatprep.subr.mxu0 0.0
        %1410 = vmatpush1.msra.mxu0 0.0
        %1411 = vmatprep.subr.mxu0 0.0
        %1412 = vmatpush1.msra.mxu0 0.0
        %1413 = vmatprep.subr.mxu0 0.0
        %1414 = vmatpush1.msra.mxu0 0.0
        %1415 = vmatprep.subr.mxu0 0.0
        %1416 = vmatpush1.msra.mxu0 0.0
        %1417 = vmatprep.subr.mxu0 0.0
        %1418 = vmatpush1.msra.mxu0 0.0
        %1419 = vmatprep.subr.mxu0 0.0
        %1420 = vmatpush1.msra.mxu0 0.0
        %1421 = vmatprep.subr.mxu0 0.0
        %1422 = vmatpush1.msra.mxu0 0.0
        %1423 = vmatprep.subr.mxu0 0.0
        %1424 = vmatpush1.msra.mxu0 0.0
        %1425 = vmatprep.subr.mxu0 0.0
        %1426 = vmatpush1.msra.mxu0 0.0
        %1427 = vmatprep.subr.mxu0 0.0
        %1428 = vmatpush1.msra.mxu0 0.0
        %1429 = vmatprep.subr.mxu0 0.0
        %1430 = vmatpush1.msra.mxu0 0.0
        %1431 = vmatprep.subr.mxu0 0.0
        %1432 = vmatpush1.msra.mxu0 0.0
        %1433 = vmatprep.subr.mxu0 0.0
        %1434 = vmatpush1.msra.mxu0 0.0
        %1435 = vmatprep.subr.mxu0 0.0
        %1436 = vmatpush1.msra.mxu0 0.0
        %1437 = vmatprep.subr.mxu0 0.0
        %1438 = vmatpush1.msra.mxu0 0.0
        %1439 = vmatprep.subr.mxu0 0.0
        %1440 = vmatpush1.msra.mxu0 0.0
        %1441 = vmatprep.mubr.f32.mxu0 0.0
        %v1442 = vand.u32 %v921, 4294901760
        %1443 = vmatmul.mubr.f32.gmra.mrb[0].mxu0 %v1442
        %v1444 = vpop.f32.mrb[0].mxu0
        %v1445 = vadd.f32 %v1364, %v1444
        %v1446 = vpop.f32.mrb[0].mxu0
        %1447 = vmatprep.mubr.f32.mxu0 0.0
        %v1448 = vand.u32 %v924, 4294901760
        %1449 = vmatmul.mubr.f32.gmra.mrb[0].mxu0 %v1448
        %v1450 = vpop.f32.mrb[0].mxu0
        %v1451 = vadd.f32 %v1370, %v1450
        %v1452 = vpop.f32.mrb[0].mxu0
        %1453 = vdwg.mxu0
        %v1454 = vld [vmem:[#allocation8] sm:$0xff]
        %v1455 = vld [vmem:[#allocation8 + $0x8] sm:$0xff]
        %v1456 = vld [vmem:[#allocation8 + $0x10] sm:$0xff]
        %v1457 = vld [vmem:[#allocation8 + $0x18] sm:$0xff]
        %v1459 = vsel %vm372, %v1445, 0
        %v1462 = vsel %vm372, %v1451, 0
        %1464 = vmatprep.subr.mxu0 0.0
        %v1465 = vand.u32 %v1454, 4294901760
        %1466 = vmatpush1.msra.mxu0 %v1465
        %1467 = vmatprep.subr.mxu0 0.0
        %v1468 = vand.u32 %v1455, 4294901760
        %1469 = vmatpush1.msra.mxu0 %v1468
        %1470 = vmatprep.subr.mxu0 0.0
        %v1471 = vand.u32 %v1456, 4294901760
        %1472 = vmatpush1.msra.mxu0 %v1471
        %1473 = vmatprep.subr.mxu0 0.0
        %v1474 = vand.u32 %v1457, 4294901760
        %1475 = vmatpush1.msra.mxu0 %v1474
        %1476 = vmatprep.subr.mxu0 0.0
        %1477 = vmatpush1.msra.mxu0 0.0
        %1478 = vmatprep.subr.mxu0 0.0
        %1479 = vmatpush1.msra.mxu0 0.0
        %1480 = vmatprep.subr.mxu0 0.0
        %1481 = vmatpush1.msra.mxu0 0.0
        %1482 = vmatprep.subr.mxu0 0.0
        %1483 = vmatpush1.msra.mxu0 0.0
        %1484 = vmatprep.subr.mxu0 0.0
        %1485 = vmatpush1.msra.mxu0 0.0
        %1486 = vmatprep.subr.mxu0 0.0
        %1487 = vmatpush1.msra.mxu0 0.0
        %1488 = vmatprep.subr.mxu0 0.0
        %1489 = vmatpush1.msra.mxu0 0.0
        %1490 = vmatprep.subr.mxu0 0.0
        %1491 = vmatpush1.msra.mxu0 0.0
        %1492 = vmatprep.subr.mxu0 0.0
        %1493 = vmatpush1.msra.mxu0 0.0
        %1494 = vmatprep.subr.mxu0 0.0
        %1495 = vmatpush1.msra.mxu0 0.0
        %1496 = vmatprep.subr.mxu0 0.0
        %1497 = vmatpush1.msra.mxu0 0.0
        %1498 = vmatprep.subr.mxu0 0.0
        %1499 = vmatpush1.msra.mxu0 0.0
        %1500 = vmatprep.subr.mxu0 0.0
        %1501 = vmatpush1.msra.mxu0 0.0
        %1502 = vmatprep.subr.mxu0 0.0
        %1503 = vmatpush1.msra.mxu0 0.0
        %1504 = vmatprep.subr.mxu0 0.0
        %1505 = vmatpush1.msra.mxu0 0.0
        %1506 = vmatprep.subr.mxu0 0.0
        %1507 = vmatpush1.msra.mxu0 0.0
        %1508 = vmatprep.subr.mxu0 0.0
        %1509 = vmatpush1.msra.mxu0 0.0
        %1510 = vmatprep.subr.mxu0 0.0
        %1511 = vmatpush1.msra.mxu0 0.0
        %1512 = vmatprep.subr.mxu0 0.0
        %1513 = vmatpush1.msra.mxu0 0.0
        %1514 = vmatprep.subr.mxu0 0.0
        %1515 = vmatpush1.msra.mxu0 0.0
        %1516 = vmatprep.subr.mxu0 0.0
        %1517 = vmatpush1.msra.mxu0 0.0
        %1518 = vmatprep.subr.mxu0 0.0
        %1519 = vmatpush1.msra.mxu0 0.0
        %1520 = vmatprep.subr.mxu0 0.0
        %1521 = vmatpush1.msra.mxu0 0.0
        %1522 = vmatprep.subr.mxu0 0.0
        %1523 = vmatpush1.msra.mxu0 0.0
        %1524 = vmatprep.subr.mxu0 0.0
        %1525 = vmatpush1.msra.mxu0 0.0
        %1526 = vmatprep.subr.mxu0 0.0
        %1527 = vmatpush1.msra.mxu0 0.0
        %1528 = vmatprep.subr.mxu0 0.0
        %1529 = vmatpush1.msra.mxu0 0.0
        %1530 = vmatprep.subr.mxu0 0.0
        %1531 = vmatpush1.msra.mxu0 0.0
        %1532 = vmatprep.mubr.f32.mxu0 0.0
        %v1533 = vand.u32 %v1459, 4294901760
        %v1534 = vsub.f32 %v1459, %v1533
        %v1535 = vand.u32 %v1534, 4294901760
        %v1536 = vsub.f32 %v1534, %v1535
        %v1537 = vand.u32 %v1536, 4294901760
        %1538 = vmatmul.mubr.f32.gmra.mrb[0].mxu0 %v1537
        %v1539 = vpop.f32.mrb[0].mxu0
        %v1540 = vadd.f32 0.0, %v1539
        %v1541 = vpop.f32.mrb[0].mxu0
        %1542 = vmatprep.mubr.f32.mxu0 0.0
        %v1543 = vand.u32 %v1462, 4294901760
        %v1544 = vsub.f32 %v1462, %v1543
        %v1545 = vand.u32 %v1544, 4294901760
        %v1546 = vsub.f32 %v1544, %v1545
        %v1547 = vand.u32 %v1546, 4294901760
        %1548 = vmatmul.mubr.f32.gmra.mrb[0].mxu0 %v1547
        %v1549 = vpop.f32.mrb[0].mxu0
        %v1550 = vadd.f32 0.0, %v1549
        %v1551 = vpop.f32.mrb[0].mxu0
        %1552 = vdwg.mxu0
        %1553 = vmatprep.subr.mxu0 0.0
        %v1554 = vand.u32 %v1454, 4294901760
        %v1555 = vsub.f32 %v1454, %v1554
        %v1556 = vand.u32 %v1555, 4294901760
        %v1557 = vsub.f32 %v1555, %v1556
        %v1558 = vand.u32 %v1557, 4294901760
        %1559 = vmatpush1.msra.mxu0 %v1558
        %1560 = vmatprep.subr.mxu0 0.0
        %v1561 = vand.u32 %v1455, 4294901760
        %v1562 = vsub.f32 %v1455, %v1561
        %v1563 = vand.u32 %v1562, 4294901760
        %v1564 = vsub.f32 %v1562, %v1563
        %v1565 = vand.u32 %v1564, 4294901760
        %1566 = vmatpush1.msra.mxu0 %v1565
        %1567 = vmatprep.subr.mxu0 0.0
        %v1568 = vand.u32 %v1456, 4294901760
        %v1569 = vsub.f32 %v1456, %v1568
        %v1570 = vand.u32 %v1569, 4294901760
        %v1571 = vsub.f32 %v1569, %v1570
        %v1572 = vand.u32 %v1571, 4294901760
        %1573 = vmatpush1.msra.mxu0 %v1572
        %1574 = vmatprep.subr.mxu0 0.0
        %v1575 = vand.u32 %v1457, 4294901760
        %v1576 = vsub.f32 %v1457, %v1575
        %v1577 = vand.u32 %v1576, 4294901760
        %v1578 = vsub.f32 %v1576, %v1577
        %v1579 = vand.u32 %v1578, 4294901760
        %1580 = vmatpush1.msra.mxu0 %v1579
        %1581 = vmatprep.subr.mxu0 0.0
        %1582 = vmatpush1.msra.mxu0 0.0
        %1583 = vmatprep.subr.mxu0 0.0
        %1584 = vmatpush1.msra.mxu0 0.0
        %1585 = vmatprep.subr.mxu0 0.0
        %1586 = vmatpush1.msra.mxu0 0.0
        %1587 = vmatprep.subr.mxu0 0.0
        %1588 = vmatpush1.msra.mxu0 0.0
        %1589 = vmatprep.subr.mxu0 0.0
        %1590 = vmatpush1.msra.mxu0 0.0
        %1591 = vmatprep.subr.mxu0 0.0
        %1592 = vmatpush1.msra.mxu0 0.0
        %1593 = vmatprep.subr.mxu0 0.0
        %1594 = vmatpush1.msra.mxu0 0.0
        %1595 = vmatprep.subr.mxu0 0.0
        %1596 = vmatpush1.msra.mxu0 0.0
        %1597 = vmatprep.subr.mxu0 0.0
        %1598 = vmatpush1.msra.mxu0 0.0
        %1599 = vmatprep.subr.mxu0 0.0
        %1600 = vmatpush1.msra.mxu0 0.0
        %1601 = vmatprep.subr.mxu0 0.0
        %1602 = vmatpush1.msra.mxu0 0.0
        %1603 = vmatprep.subr.mxu0 0.0
        %1604 = vmatpush1.msra.mxu0 0.0
        %1605 = vmatprep.subr.mxu0 0.0
        %1606 = vmatpush1.msra.mxu0 0.0
        %1607 = vmatprep.subr.mxu0 0.0
        %1608 = vmatpush1.msra.mxu0 0.0
        %1609 = vmatprep.subr.mxu0 0.0
        %1610 = vmatpush1.msra.mxu0 0.0
        %1611 = vmatprep.subr.mxu0 0.0
        %1612 = vmatpush1.msra.mxu0 0.0
        %1613 = vmatprep.subr.mxu0 0.0
        %1614 = vmatpush1.msra.mxu0 0.0
        %1615 = vmatprep.subr.mxu0 0.0
        %1616 = vmatpush1.msra.mxu0 0.0
        %1617 = vmatprep.subr.mxu0 0.0
        %1618 = vmatpush1.msra.mxu0 0.0
        %1619 = vmatprep.subr.mxu0 0.0
        %1620 = vmatpush1.msra.mxu0 0.0
        %1621 = vmatprep.subr.mxu0 0.0
        %1622 = vmatpush1.msra.mxu0 0.0
        %1623 = vmatprep.subr.mxu0 0.0
        %1624 = vmatpush1.msra.mxu0 0.0
        %1625 = vmatprep.subr.mxu0 0.0
        %1626 = vmatpush1.msra.mxu0 0.0
        %1627 = vmatprep.subr.mxu0 0.0
        %1628 = vmatpush1.msra.mxu0 0.0
        %1629 = vmatprep.subr.mxu0 0.0
        %1630 = vmatpush1.msra.mxu0 0.0
        %1631 = vmatprep.subr.mxu0 0.0
        %1632 = vmatpush1.msra.mxu0 0.0
        %1633 = vmatprep.subr.mxu0 0.0
        %1634 = vmatpush1.msra.mxu0 0.0
        %1635 = vmatprep.subr.mxu0 0.0
        %1636 = vmatpush1.msra.mxu0 0.0
        %1637 = vmatprep.mubr.f32.mxu0 0.0
        %v1638 = vand.u32 %v1459, 4294901760
        %1639 = vmatmul.mubr.f32.gmra.mrb[0].mxu0 %v1638
        %v1640 = vpop.f32.mrb[0].mxu0
        %v1641 = vadd.f32 %v1540, %v1640
        %v1642 = vpop.f32.mrb[0].mxu0
        %1643 = vmatprep.mubr.f32.mxu0 0.0
        %v1644 = vand.u32 %v1462, 4294901760
        %1645 = vmatmul.mubr.f32.gmra.mrb[0].mxu0 %v1644
        %v1646 = vpop.f32.mrb[0].mxu0
        %v1647 = vadd.f32 %v1550, %v1646
        %v1648 = vpop.f32.mrb[0].mxu0
        %1649 = vdwg.mxu0
        %1650 = vmatprep.subr.mxu0 0.0
        %v1651 = vand.u32 %v1454, 4294901760
        %v1652 = vsub.f32 %v1454, %v1651
        %1653 = vmatpush1.msra.mxu0 %v1652
        %1654 = vmatprep.subr.mxu0 0.0
        %v1655 = vand.u32 %v1455, 4294901760
        %v1656 = vsub.f32 %v1455, %v1655
        %1657 = vmatpush1.msra.mxu0 %v1656
        %1658 = vmatprep.subr.mxu0 0.0
        %v1659 = vand.u32 %v1456, 4294901760
        %v1660 = vsub.f32 %v1456, %v1659
        %1661 = vmatpush1.msra.mxu0 %v1660
        %1662 = vmatprep.subr.mxu0 0.0
        %v1663 = vand.u32 %v1457, 4294901760
        %v1664 = vsub.f32 %v1457, %v1663
        %1665 = vmatpush1.msra.mxu0 %v1664
        %1666 = vmatprep.subr.mxu0 0.0
        %1667 = vmatpush1.msra.mxu0 0.0
        %1668 = vmatprep.subr.mxu0 0.0
        %1669 = vmatpush1.msra.mxu0 0.0
        %1670 = vmatprep.subr.mxu0 0.0
        %1671 = vmatpush1.msra.mxu0 0.0
        %1672 = vmatprep.subr.mxu0 0.0
        %1673 = vmatpush1.msra.mxu0 0.0
        %1674 = vmatprep.subr.mxu0 0.0
        %1675 = vmatpush1.msra.mxu0 0.0
        %1676 = vmatprep.subr.mxu0 0.0
        %1677 = vmatpush1.msra.mxu0 0.0
        %1678 = vmatprep.subr.mxu0 0.0
        %1679 = vmatpush1.msra.mxu0 0.0
        %1680 = vmatprep.subr.mxu0 0.0
        %1681 = vmatpush1.msra.mxu0 0.0
        %1682 = vmatprep.subr.mxu0 0.0
        %1683 = vmatpush1.msra.mxu0 0.0
        %1684 = vmatprep.subr.mxu0 0.0
        %1685 = vmatpush1.msra.mxu0 0.0
        %1686 = vmatprep.subr.mxu0 0.0
        %1687 = vmatpush1.msra.mxu0 0.0
        %1688 = vmatprep.subr.mxu0 0.0
        %1689 = vmatpush1.msra.mxu0 0.0
        %1690 = vmatprep.subr.mxu0 0.0
        %1691 = vmatpush1.msra.mxu0 0.0
        %1692 = vmatprep.subr.mxu0 0.0
        %1693 = vmatpush1.msra.mxu0 0.0
        %1694 = vmatprep.subr.mxu0 0.0
        %1695 = vmatpush1.msra.mxu0 0.0
        %1696 = vmatprep.subr.mxu0 0.0
        %1697 = vmatpush1.msra.mxu0 0.0
        %1698 = vmatprep.subr.mxu0 0.0
        %1699 = vmatpush1.msra.mxu0 0.0
        %1700 = vmatprep.subr.mxu0 0.0
        %1701 = vmatpush1.msra.mxu0 0.0
        %1702 = vmatprep.subr.mxu0 0.0
        %1703 = vmatpush1.msra.mxu0 0.0
        %1704 = vmatprep.subr.mxu0 0.0
        %1705 = vmatpush1.msra.mxu0 0.0
        %1706 = vmatprep.subr.mxu0 0.0
        %1707 = vmatpush1.msra.mxu0 0.0
        %1708 = vmatprep.subr.mxu0 0.0
        %1709 = vmatpush1.msra.mxu0 0.0
        %1710 = vmatprep.subr.mxu0 0.0
        %1711 = vmatpush1.msra.mxu0 0.0
        %1712 = vmatprep.subr.mxu0 0.0
        %1713 = vmatpush1.msra.mxu0 0.0
        %1714 = vmatprep.subr.mxu0 0.0
        %1715 = vmatpush1.msra.mxu0 0.0
        %1716 = vmatprep.subr.mxu0 0.0
        %1717 = vmatpush1.msra.mxu0 0.0
        %1718 = vmatprep.subr.mxu0 0.0
        %1719 = vmatpush1.msra.mxu0 0.0
        %1720 = vmatprep.subr.mxu0 0.0
        %1721 = vmatpush1.msra.mxu0 0.0
        %1722 = vmatprep.mubr.f32.mxu0 0.0
        %v1723 = vand.u32 %v1459, 4294901760
        %v1724 = vsub.f32 %v1459, %v1723
        %1725 = vmatmul.mubr.f32.gmra.mrb[0].mxu0 %v1724
        %v1726 = vpop.f32.mrb[0].mxu0
        %v1727 = vadd.f32 %v1641, %v1726
        %v1728 = vpop.f32.mrb[0].mxu0
        %1729 = vmatprep.mubr.f32.mxu0 0.0
        %v1730 = vand.u32 %v1462, 4294901760
        %v1731 = vsub.f32 %v1462, %v1730
        %1732 = vmatmul.mubr.f32.gmra.mrb[0].mxu0 %v1731
        %v1733 = vpop.f32.mrb[0].mxu0
        %v1734 = vadd.f32 %v1647, %v1733
        %v1735 = vpop.f32.mrb[0].mxu0
        %1736 = vdwg.mxu0
        %1737 = vmatprep.subr.mxu0 0.0
        %v1738 = vand.u32 %v1454, 4294901760
        %1739 = vmatpush1.msra.mxu0 %v1738
        %1740 = vmatprep.subr.mxu0 0.0
        %v1741 = vand.u32 %v1455, 4294901760
        %1742 = vmatpush1.msra.mxu0 %v1741
        %1743 = vmatprep.subr.mxu0 0.0
        %v1744 = vand.u32 %v1456, 4294901760
        %1745 = vmatpush1.msra.mxu0 %v1744
        %1746 = vmatprep.subr.mxu0 0.0
        %v1747 = vand.u32 %v1457, 4294901760
        %1748 = vmatpush1.msra.mxu0 %v1747
        %1749 = vmatprep.subr.mxu0 0.0
        %1750 = vmatpush1.msra.mxu0 0.0
        %1751 = vmatprep.subr.mxu0 0.0
        %1752 = vmatpush1.msra.mxu0 0.0
        %1753 = vmatprep.subr.mxu0 0.0
        %1754 = vmatpush1.msra.mxu0 0.0
        %1755 = vmatprep.subr.mxu0 0.0
        %1756 = vmatpush1.msra.mxu0 0.0
        %1757 = vmatprep.subr.mxu0 0.0
        %1758 = vmatpush1.msra.mxu0 0.0
        %1759 = vmatprep.subr.mxu0 0.0
        %1760 = vmatpush1.msra.mxu0 0.0
        %1761 = vmatprep.subr.mxu0 0.0
        %1762 = vmatpush1.msra.mxu0 0.0
        %1763 = vmatprep.subr.mxu0 0.0
        %1764 = vmatpush1.msra.mxu0 0.0
        %1765 = vmatprep.subr.mxu0 0.0
        %1766 = vmatpush1.msra.mxu0 0.0
        %1767 = vmatprep.subr.mxu0 0.0
        %1768 = vmatpush1.msra.mxu0 0.0
        %1769 = vmatprep.subr.mxu0 0.0
        %1770 = vmatpush1.msra.mxu0 0.0
        %1771 = vmatprep.subr.mxu0 0.0
        %1772 = vmatpush1.msra.mxu0 0.0
        %1773 = vmatprep.subr.mxu0 0.0
        %1774 = vmatpush1.msra.mxu0 0.0
        %1775 = vmatprep.subr.mxu0 0.0
        %1776 = vmatpush1.msra.mxu0 0.0
        %1777 = vmatprep.subr.mxu0 0.0
        %1778 = vmatpush1.msra.mxu0 0.0
        %1779 = vmatprep.subr.mxu0 0.0
        %1780 = vmatpush1.msra.mxu0 0.0
        %1781 = vmatprep.subr.mxu0 0.0
        %1782 = vmatpush1.msra.mxu0 0.0
        %1783 = vmatprep.subr.mxu0 0.0
        %1784 = vmatpush1.msra.mxu0 0.0
        %1785 = vmatprep.subr.mxu0 0.0
        %1786 = vmatpush1.msra.mxu0 0.0
        %1787 = vmatprep.subr.mxu0 0.0
        %1788 = vmatpush1.msra.mxu0 0.0
        %1789 = vmatprep.subr.mxu0 0.0
        %1790 = vmatpush1.msra.mxu0 0.0
        %1791 = vmatprep.subr.mxu0 0.0
        %1792 = vmatpush1.msra.mxu0 0.0
        %1793 = vmatprep.subr.mxu0 0.0
        %1794 = vmatpush1.msra.mxu0 0.0
        %1795 = vmatprep.subr.mxu0 0.0
        %1796 = vmatpush1.msra.mxu0 0.0
        %1797 = vmatprep.subr.mxu0 0.0
        %1798 = vmatpush1.msra.mxu0 0.0
        %1799 = vmatprep.subr.mxu0 0.0
        %1800 = vmatpush1.msra.mxu0 0.0
        %1801 = vmatprep.subr.mxu0 0.0
        %1802 = vmatpush1.msra.mxu0 0.0
        %1803 = vmatprep.subr.mxu0 0.0
        %1804 = vmatpush1.msra.mxu0 0.0
        %1805 = vmatprep.mubr.f32.mxu0 0.0
        %v1806 = vand.u32 %v1459, 4294901760
        %v1807 = vsub.f32 %v1459, %v1806
        %v1808 = vand.u32 %v1807, 4294901760
        %1809 = vmatmul.mubr.f32.gmra.mrb[0].mxu0 %v1808
        %v1810 = vpop.f32.mrb[0].mxu0
        %v1811 = vadd.f32 %v1727, %v1810
        %v1812 = vpop.f32.mrb[0].mxu0
        %1813 = vmatprep.mubr.f32.mxu0 0.0
        %v1814 = vand.u32 %v1462, 4294901760
        %v1815 = vsub.f32 %v1462, %v1814
        %v1816 = vand.u32 %v1815, 4294901760
        %1817 = vmatmul.mubr.f32.gmra.mrb[0].mxu0 %v1816
        %v1818 = vpop.f32.mrb[0].mxu0
        %v1819 = vadd.f32 %v1734, %v1818
        %v1820 = vpop.f32.mrb[0].mxu0
        %1821 = vdwg.mxu0
        %1822 = vmatprep.subr.mxu0 0.0
        %v1823 = vand.u32 %v1454, 4294901760
        %v1824 = vsub.f32 %v1454, %v1823
        %v1825 = vand.u32 %v1824, 4294901760
        %1826 = vmatpush1.msra.mxu0 %v1825
        %1827 = vmatprep.subr.mxu0 0.0
        %v1828 = vand.u32 %v1455, 4294901760
        %v1829 = vsub.f32 %v1455, %v1828
        %v1830 = vand.u32 %v1829, 4294901760
        %1831 = vmatpush1.msra.mxu0 %v1830
        %1832 = vmatprep.subr.mxu0 0.0
        %v1833 = vand.u32 %v1456, 4294901760
        %v1834 = vsub.f32 %v1456, %v1833
        %v1835 = vand.u32 %v1834, 4294901760
        %1836 = vmatpush1.msra.mxu0 %v1835
        %1837 = vmatprep.subr.mxu0 0.0
        %v1838 = vand.u32 %v1457, 4294901760
        %v1839 = vsub.f32 %v1457, %v1838
        %v1840 = vand.u32 %v1839, 4294901760
        %1841 = vmatpush1.msra.mxu0 %v1840
        %1842 = vmatprep.subr.mxu0 0.0
        %1843 = vmatpush1.msra.mxu0 0.0
        %1844 = vmatprep.subr.mxu0 0.0
        %1845 = vmatpush1.msra.mxu0 0.0
        %1846 = vmatprep.subr.mxu0 0.0
        %1847 = vmatpush1.msra.mxu0 0.0
        %1848 = vmatprep.subr.mxu0 0.0
        %1849 = vmatpush1.msra.mxu0 0.0
        %1850 = vmatprep.subr.mxu0 0.0
        %1851 = vmatpush1.msra.mxu0 0.0
        %1852 = vmatprep.subr.mxu0 0.0
        %1853 = vmatpush1.msra.mxu0 0.0
        %1854 = vmatprep.subr.mxu0 0.0
        %1855 = vmatpush1.msra.mxu0 0.0
        %1856 = vmatprep.subr.mxu0 0.0
        %1857 = vmatpush1.msra.mxu0 0.0
        %1858 = vmatprep.subr.mxu0 0.0
        %1859 = vmatpush1.msra.mxu0 0.0
        %1860 = vmatprep.subr.mxu0 0.0
        %1861 = vmatpush1.msra.mxu0 0.0
        %1862 = vmatprep.subr.mxu0 0.0
        %1863 = vmatpush1.msra.mxu0 0.0
        %1864 = vmatprep.subr.mxu0 0.0
        %1865 = vmatpush1.msra.mxu0 0.0
        %1866 = vmatprep.subr.mxu0 0.0
        %1867 = vmatpush1.msra.mxu0 0.0
        %1868 = vmatprep.subr.mxu0 0.0
        %1869 = vmatpush1.msra.mxu0 0.0
        %1870 = vmatprep.subr.mxu0 0.0
        %1871 = vmatpush1.msra.mxu0 0.0
        %1872 = vmatprep.subr.mxu0 0.0
        %1873 = vmatpush1.msra.mxu0 0.0
        %1874 = vmatprep.subr.mxu0 0.0
        %1875 = vmatpush1.msra.mxu0 0.0
        %1876 = vmatprep.subr.mxu0 0.0
        %1877 = vmatpush1.msra.mxu0 0.0
        %1878 = vmatprep.subr.mxu0 0.0
        %1879 = vmatpush1.msra.mxu0 0.0
        %1880 = vmatprep.subr.mxu0 0.0
        %1881 = vmatpush1.msra.mxu0 0.0
        %1882 = vmatprep.subr.mxu0 0.0
        %1883 = vmatpush1.msra.mxu0 0.0
        %1884 = vmatprep.subr.mxu0 0.0
        %1885 = vmatpush1.msra.mxu0 0.0
        %1886 = vmatprep.subr.mxu0 0.0
        %1887 = vmatpush1.msra.mxu0 0.0
        %1888 = vmatprep.subr.mxu0 0.0
        %1889 = vmatpush1.msra.mxu0 0.0
        %1890 = vmatprep.subr.mxu0 0.0
        %1891 = vmatpush1.msra.mxu0 0.0
        %1892 = vmatprep.subr.mxu0 0.0
        %1893 = vmatpush1.msra.mxu0 0.0
        %1894 = vmatprep.subr.mxu0 0.0
        %1895 = vmatpush1.msra.mxu0 0.0
        %1896 = vmatprep.subr.mxu0 0.0
        %1897 = vmatpush1.msra.mxu0 0.0
        %1898 = vmatprep.mubr.f32.mxu0 0.0
        %v1899 = vand.u32 %v1459, 4294901760
        %1900 = vmatmul.mubr.f32.gmra.mrb[0].mxu0 %v1899
        %v1901 = vpop.f32.mrb[0].mxu0
        %v1902 = vadd.f32 %v1811, %v1901
        %v1903 = vpop.f32.mrb[0].mxu0
        %1904 = vmatprep.mubr.f32.mxu0 0.0
        %v1905 = vand.u32 %v1462, 4294901760
        %1906 = vmatmul.mubr.f32.gmra.mrb[0].mxu0 %v1905
        %v1907 = vpop.f32.mrb[0].mxu0
        %v1908 = vadd.f32 %v1819, %v1907
        %v1909 = vpop.f32.mrb[0].mxu0
        %1910 = vdwg.mxu0
        %1911 = vmatprep.subr.mxu0 0.0
        %v1912 = vand.u32 %v1454, 4294901760
        %1913 = vmatpush1.msra.mxu0 %v1912
        %1914 = vmatprep.subr.mxu0 0.0
        %v1915 = vand.u32 %v1455, 4294901760
        %1916 = vmatpush1.msra.mxu0 %v1915
        %1917 = vmatprep.subr.mxu0 0.0
        %v1918 = vand.u32 %v1456, 4294901760
        %1919 = vmatpush1.msra.mxu0 %v1918
        %1920 = vmatprep.subr.mxu0 0.0
        %v1921 = vand.u32 %v1457, 4294901760
        %1922 = vmatpush1.msra.mxu0 %v1921
        %1923 = vmatprep.subr.mxu0 0.0
        %1924 = vmatpush1.msra.mxu0 0.0
        %1925 = vmatprep.subr.mxu0 0.0
        %1926 = vmatpush1.msra.mxu0 0.0
        %1927 = vmatprep.subr.mxu0 0.0
        %1928 = vmatpush1.msra.mxu0 0.0
        %1929 = vmatprep.subr.mxu0 0.0
        %1930 = vmatpush1.msra.mxu0 0.0
        %1931 = vmatprep.subr.mxu0 0.0
        %1932 = vmatpush1.msra.mxu0 0.0
        %1933 = vmatprep.subr.mxu0 0.0
        %1934 = vmatpush1.msra.mxu0 0.0
        %1935 = vmatprep.subr.mxu0 0.0
        %1936 = vmatpush1.msra.mxu0 0.0
        %1937 = vmatprep.subr.mxu0 0.0
        %1938 = vmatpush1.msra.mxu0 0.0
        %1939 = vmatprep.subr.mxu0 0.0
        %1940 = vmatpush1.msra.mxu0 0.0
        %1941 = vmatprep.subr.mxu0 0.0
        %1942 = vmatpush1.msra.mxu0 0.0
        %1943 = vmatprep.subr.mxu0 0.0
        %1944 = vmatpush1.msra.mxu0 0.0
        %1945 = vmatprep.subr.mxu0 0.0
        %1946 = vmatpush1.msra.mxu0 0.0
        %1947 = vmatprep.subr.mxu0 0.0
        %1948 = vmatpush1.msra.mxu0 0.0
        %1949 = vmatprep.subr.mxu0 0.0
        %1950 = vmatpush1.msra.mxu0 0.0
        %1951 = vmatprep.subr.mxu0 0.0
        %1952 = vmatpush1.msra.mxu0 0.0
        %1953 = vmatprep.subr.mxu0 0.0
        %1954 = vmatpush1.msra.mxu0 0.0
        %1955 = vmatprep.subr.mxu0 0.0
        %1956 = vmatpush1.msra.mxu0 0.0
        %1957 = vmatprep.subr.mxu0 0.0
        %1958 = vmatpush1.msra.mxu0 0.0
        %1959 = vmatprep.subr.mxu0 0.0
        %1960 = vmatpush1.msra.mxu0 0.0
        %1961 = vmatprep.subr.mxu0 0.0
        %1962 = vmatpush1.msra.mxu0 0.0
        %1963 = vmatprep.subr.mxu0 0.0
        %1964 = vmatpush1.msra.mxu0 0.0
        %1965 = vmatprep.subr.mxu0 0.0
        %1966 = vmatpush1.msra.mxu0 0.0
        %1967 = vmatprep.subr.mxu0 0.0
        %1968 = vmatpush1.msra.mxu0 0.0
        %1969 = vmatprep.subr.mxu0 0.0
        %1970 = vmatpush1.msra.mxu0 0.0
        %1971 = vmatprep.subr.mxu0 0.0
        %1972 = vmatpush1.msra.mxu0 0.0
        %1973 = vmatprep.subr.mxu0 0.0
        %1974 = vmatpush1.msra.mxu0 0.0
        %1975 = vmatprep.subr.mxu0 0.0
        %1976 = vmatpush1.msra.mxu0 0.0
        %1977 = vmatprep.subr.mxu0 0.0
        %1978 = vmatpush1.msra.mxu0 0.0
        %1979 = vmatprep.mubr.f32.mxu0 0.0
        %v1980 = vand.u32 %v1459, 4294901760
        %1981 = vmatmul.mubr.f32.gmra.mrb[0].mxu0 %v1980
        %v1982 = vpop.f32.mrb[0].mxu0
        %v1983 = vadd.f32 %v1902, %v1982
        %v1984 = vpop.f32.mrb[0].mxu0
        %1985 = vmatprep.mubr.f32.mxu0 0.0
        %v1986 = vand.u32 %v1462, 4294901760
        %1987 = vmatmul.mubr.f32.gmra.mrb[0].mxu0 %v1986
        %v1988 = vpop.f32.mrb[0].mxu0
        %v1989 = vadd.f32 %v1908, %v1988
        %v1990 = vpop.f32.mrb[0].mxu0
        %1991 = vdwg.mxu0
        %v1993 = vsel %vm372, %v1983, 0
        %v1996 = vsel %vm372, %v1989, 0
        %1998 = vmatprep.subr.mxu0 0.0
        %v1999 = vand.u32 %v1459, 4294901760
        %2000 = vmatpush1.xpose.msra.mxu0 %v1999
        %2001 = vmatprep.subr.mxu0 0.0
        %v2002 = vand.u32 %v1462, 4294901760
        %2003 = vmatpush1.xpose.msra.mxu0 %v2002
        %2004 = vmatprep.subr.mxu0 0.0
        %2005 = vmatpush1.xpose.msra.mxu0 0.0
        %2006 = vmatprep.subr.mxu0 0.0
        %2007 = vmatpush1.xpose.msra.mxu0 0.0
        %2008 = vmatprep.subr.mxu0 0.0
        %2009 = vmatpush1.xpose.msra.mxu0 0.0
        %2010 = vmatprep.subr.mxu0 0.0
        %2011 = vmatpush1.xpose.msra.mxu0 0.0
        %2012 = vmatprep.subr.mxu0 0.0
        %2013 = vmatpush1.xpose.msra.mxu0 0.0
        %2014 = vmatprep.subr.mxu0 0.0
        %2015 = vmatpush1.xpose.msra.mxu0 0.0
        %2016 = vmatprep.subr.mxu0 0.0
        %2017 = vmatpush1.xpose.msra.mxu0 0.0
        %2018 = vmatprep.subr.mxu0 0.0
        %2019 = vmatpush1.xpose.msra.mxu0 0.0
        %2020 = vmatprep.subr.mxu0 0.0
        %2021 = vmatpush1.xpose.msra.mxu0 0.0
        %2022 = vmatprep.subr.mxu0 0.0
        %2023 = vmatpush1.xpose.msra.mxu0 0.0
        %2024 = vmatprep.subr.mxu0 0.0
        %2025 = vmatpush1.xpose.msra.mxu0 0.0
        %2026 = vmatprep.subr.mxu0 0.0
        %2027 = vmatpush1.xpose.msra.mxu0 0.0
        %2028 = vmatprep.subr.mxu0 0.0
        %2029 = vmatpush1.xpose.msra.mxu0 0.0
        %2030 = vmatprep.subr.mxu0 0.0
        %2031 = vmatpush1.xpose.msra.mxu0 0.0
        %2032 = vmatprep.subr.mxu0 0.0
        %2033 = vmatpush1.xpose.msra.mxu0 0.0
        %2034 = vmatprep.subr.mxu0 0.0
        %2035 = vmatpush1.xpose.msra.mxu0 0.0
        %2036 = vmatprep.subr.mxu0 0.0
        %2037 = vmatpush1.xpose.msra.mxu0 0.0
        %2038 = vmatprep.subr.mxu0 0.0
        %2039 = vmatpush1.xpose.msra.mxu0 0.0
        %2040 = vmatprep.subr.mxu0 0.0
        %2041 = vmatpush1.xpose.msra.mxu0 0.0
        %2042 = vmatprep.subr.mxu0 0.0
        %2043 = vmatpush1.xpose.msra.mxu0 0.0
        %2044 = vmatprep.subr.mxu0 0.0
        %2045 = vmatpush1.xpose.msra.mxu0 0.0
        %2046 = vmatprep.subr.mxu0 0.0
        %2047 = vmatpush1.xpose.msra.mxu0 0.0
        %2048 = vmatprep.subr.mxu0 0.0
        %2049 = vmatpush1.xpose.msra.mxu0 0.0
        %2050 = vmatprep.subr.mxu0 0.0
        %2051 = vmatpush1.xpose.msra.mxu0 0.0
        %2052 = vmatprep.subr.mxu0 0.0
        %2053 = vmatpush1.xpose.msra.mxu0 0.0
        %2054 = vmatprep.subr.mxu0 0.0
        %2055 = vmatpush1.xpose.msra.mxu0 0.0
        %2056 = vmatprep.subr.mxu0 0.0
        %2057 = vmatpush1.xpose.msra.mxu0 0.0
        %2058 = vmatprep.subr.mxu0 0.0
        %2059 = vmatpush1.xpose.msra.mxu0 0.0
        %2060 = vmatprep.subr.mxu0 0.0
        %2061 = vmatpush1.xpose.msra.mxu0 0.0
        %2062 = vmatprep.subr.mxu0 0.0
        %2063 = vmatpush1.xpose.msra.mxu0 0.0
        %2064 = vmatprep.mubr.f32.mxu0 0.0
        %v2065 = vand.u32 %v1993, 4294901760
        %v2066 = vsub.f32 %v1993, %v2065
        %v2067 = vand.u32 %v2066, 4294901760
        %v2068 = vsub.f32 %v2066, %v2067
        %v2069 = vand.u32 %v2068, 4294901760
        %2070 = vmatmul.mubr.f32.gmra.mrb[0].mxu0 %v2069
        %v2071 = vpop.f32.mrb[0].mxu0
        %v2072 = vadd.f32 0.0, %v2071
        %v2073 = vpop.f32.mrb[0].mxu0
        %2074 = vmatprep.mubr.f32.mxu0 0.0
        %v2075 = vand.u32 %v1996, 4294901760
        %v2076 = vsub.f32 %v1996, %v2075
        %v2077 = vand.u32 %v2076, 4294901760
        %v2078 = vsub.f32 %v2076, %v2077
        %v2079 = vand.u32 %v2078, 4294901760
        %2080 = vmatmul.mubr.f32.gmra.mrb[0].mxu0 %v2079
        %v2081 = vpop.f32.mrb[0].mxu0
        %v2082 = vadd.f32 0.0, %v2081
        %v2083 = vpop.f32.mrb[0].mxu0
        %2084 = vdwg.mxu0
        %2085 = vmatprep.subr.mxu0 0.0
        %v2086 = vand.u32 %v1459, 4294901760
        %v2087 = vsub.f32 %v1459, %v2086
        %v2088 = vand.u32 %v2087, 4294901760
        %v2089 = vsub.f32 %v2087, %v2088
        %v2090 = vand.u32 %v2089, 4294901760
        %2091 = vmatpush1.xpose.msra.mxu0 %v2090
        %2092 = vmatprep.subr.mxu0 0.0
        %v2093 = vand.u32 %v1462, 4294901760
        %v2094 = vsub.f32 %v1462, %v2093
        %v2095 = vand.u32 %v2094, 4294901760
        %v2096 = vsub.f32 %v2094, %v2095
        %v2097 = vand.u32 %v2096, 4294901760
        %2098 = vmatpush1.xpose.msra.mxu0 %v2097
        %2099 = vmatprep.subr.mxu0 0.0
        %2100 = vmatpush1.xpose.msra.mxu0 0.0
        %2101 = vmatprep.subr.mxu0 0.0
        %2102 = vmatpush1.xpose.msra.mxu0 0.0
        %2103 = vmatprep.subr.mxu0 0.0
        %2104 = vmatpush1.xpose.msra.mxu0 0.0
        %2105 = vmatprep.subr.mxu0 0.0
        %2106 = vmatpush1.xpose.msra.mxu0 0.0
        %2107 = vmatprep.subr.mxu0 0.0
        %2108 = vmatpush1.xpose.msra.mxu0 0.0
        %2109 = vmatprep.subr.mxu0 0.0
        %2110 = vmatpush1.xpose.msra.mxu0 0.0
        %2111 = vmatprep.subr.mxu0 0.0
        %2112 = vmatpush1.xpose.msra.mxu0 0.0
        %2113 = vmatprep.subr.mxu0 0.0
        %2114 = vmatpush1.xpose.msra.mxu0 0.0
        %2115 = vmatprep.subr.mxu0 0.0
        %2116 = vmatpush1.xpose.msra.mxu0 0.0
        %2117 = vmatprep.subr.mxu0 0.0
        %2118 = vmatpush1.xpose.msra.mxu0 0.0
        %2119 = vmatprep.subr.mxu0 0.0
        %2120 = vmatpush1.xpose.msra.mxu0 0.0
        %2121 = vmatprep.subr.mxu0 0.0
        %2122 = vmatpush1.xpose.msra.mxu0 0.0
        %2123 = vmatprep.subr.mxu0 0.0
        %2124 = vmatpush1.xpose.msra.mxu0 0.0
        %2125 = vmatprep.subr.mxu0 0.0
        %2126 = vmatpush1.xpose.msra.mxu0 0.0
        %2127 = vmatprep.subr.mxu0 0.0
        %2128 = vmatpush1.xpose.msra.mxu0 0.0
        %2129 = vmatprep.subr.mxu0 0.0
        %2130 = vmatpush1.xpose.msra.mxu0 0.0
        %2131 = vmatprep.subr.mxu0 0.0
        %2132 = vmatpush1.xpose.msra.mxu0 0.0
        %2133 = vmatprep.subr.mxu0 0.0
        %2134 = vmatpush1.xpose.msra.mxu0 0.0
        %2135 = vmatprep.subr.mxu0 0.0
        %2136 = vmatpush1.xpose.msra.mxu0 0.0
        %2137 = vmatprep.subr.mxu0 0.0
        %2138 = vmatpush1.xpose.msra.mxu0 0.0
        %2139 = vmatprep.subr.mxu0 0.0
        %2140 = vmatpush1.xpose.msra.mxu0 0.0
        %2141 = vmatprep.subr.mxu0 0.0
        %2142 = vmatpush1.xpose.msra.mxu0 0.0
        %2143 = vmatprep.subr.mxu0 0.0
        %2144 = vmatpush1.xpose.msra.mxu0 0.0
        %2145 = vmatprep.subr.mxu0 0.0
        %2146 = vmatpush1.xpose.msra.mxu0 0.0
        %2147 = vmatprep.subr.mxu0 0.0
        %2148 = vmatpush1.xpose.msra.mxu0 0.0
        %2149 = vmatprep.subr.mxu0 0.0
        %2150 = vmatpush1.xpose.msra.mxu0 0.0
        %2151 = vmatprep.subr.mxu0 0.0
        %2152 = vmatpush1.xpose.msra.mxu0 0.0
        %2153 = vmatprep.subr.mxu0 0.0
        %2154 = vmatpush1.xpose.msra.mxu0 0.0
        %2155 = vmatprep.subr.mxu0 0.0
        %2156 = vmatpush1.xpose.msra.mxu0 0.0
        %2157 = vmatprep.subr.mxu0 0.0
        %2158 = vmatpush1.xpose.msra.mxu0 0.0
        %2159 = vmatprep.mubr.f32.mxu0 0.0
        %v2160 = vand.u32 %v1993, 4294901760
        %2161 = vmatmul.mubr.f32.gmra.mrb[0].mxu0 %v2160
        %v2162 = vpop.f32.mrb[0].mxu0
        %v2163 = vadd.f32 %v2072, %v2162
        %v2164 = vpop.f32.mrb[0].mxu0
        %2165 = vmatprep.mubr.f32.mxu0 0.0
        %v2166 = vand.u32 %v1996, 4294901760
        %2167 = vmatmul.mubr.f32.gmra.mrb[0].mxu0 %v2166
        %v2168 = vpop.f32.mrb[0].mxu0
        %v2169 = vadd.f32 %v2082, %v2168
        %v2170 = vpop.f32.mrb[0].mxu0
        %2171 = vdwg.mxu0
        %2172 = vmatprep.subr.mxu0 0.0
        %v2173 = vand.u32 %v1459, 4294901760
        %v2174 = vsub.f32 %v1459, %v2173
        %2175 = vmatpush1.xpose.msra.mxu0 %v2174
        %2176 = vmatprep.subr.mxu0 0.0
        %v2177 = vand.u32 %v1462, 4294901760
        %v2178 = vsub.f32 %v1462, %v2177
        %2179 = vmatpush1.xpose.msra.mxu0 %v2178
        %2180 = vmatprep.subr.mxu0 0.0
        %2181 = vmatpush1.xpose.msra.mxu0 0.0
        %2182 = vmatprep.subr.mxu0 0.0
        %2183 = vmatpush1.xpose.msra.mxu0 0.0
        %2184 = vmatprep.subr.mxu0 0.0
        %2185 = vmatpush1.xpose.msra.mxu0 0.0
        %2186 = vmatprep.subr.mxu0 0.0
        %2187 = vmatpush1.xpose.msra.mxu0 0.0
        %2188 = vmatprep.subr.mxu0 0.0
        %2189 = vmatpush1.xpose.msra.mxu0 0.0
        %2190 = vmatprep.subr.mxu0 0.0
        %2191 = vmatpush1.xpose.msra.mxu0 0.0
        %2192 = vmatprep.subr.mxu0 0.0
        %2193 = vmatpush1.xpose.msra.mxu0 0.0
        %2194 = vmatprep.subr.mxu0 0.0
        %2195 = vmatpush1.xpose.msra.mxu0 0.0
        %2196 = vmatprep.subr.mxu0 0.0
        %2197 = vmatpush1.xpose.msra.mxu0 0.0
        %2198 = vmatprep.subr.mxu0 0.0
        %2199 = vmatpush1.xpose.msra.mxu0 0.0
        %2200 = vmatprep.subr.mxu0 0.0
        %2201 = vmatpush1.xpose.msra.mxu0 0.0
        %2202 = vmatprep.subr.mxu0 0.0
        %2203 = vmatpush1.xpose.msra.mxu0 0.0
        %2204 = vmatprep.subr.mxu0 0.0
        %2205 = vmatpush1.xpose.msra.mxu0 0.0
        %2206 = vmatprep.subr.mxu0 0.0
        %2207 = vmatpush1.xpose.msra.mxu0 0.0
        %2208 = vmatprep.subr.mxu0 0.0
        %2209 = vmatpush1.xpose.msra.mxu0 0.0
        %2210 = vmatprep.subr.mxu0 0.0
        %2211 = vmatpush1.xpose.msra.mxu0 0.0
        %2212 = vmatprep.subr.mxu0 0.0
        %2213 = vmatpush1.xpose.msra.mxu0 0.0
        %2214 = vmatprep.subr.mxu0 0.0
        %2215 = vmatpush1.xpose.msra.mxu0 0.0
        %2216 = vmatprep.subr.mxu0 0.0
        %2217 = vmatpush1.xpose.msra.mxu0 0.0
        %2218 = vmatprep.subr.mxu0 0.0
        %2219 = vmatpush1.xpose.msra.mxu0 0.0
        %2220 = vmatprep.subr.mxu0 0.0
        %2221 = vmatpush1.xpose.msra.mxu0 0.0
        %2222 = vmatprep.subr.mxu0 0.0
        %2223 = vmatpush1.xpose.msra.mxu0 0.0
        %2224 = vmatprep.subr.mxu0 0.0
        %2225 = vmatpush1.xpose.msra.mxu0 0.0
        %2226 = vmatprep.subr.mxu0 0.0
        %2227 = vmatpush1.xpose.msra.mxu0 0.0
        %2228 = vmatprep.subr.mxu0 0.0
        %2229 = vmatpush1.xpose.msra.mxu0 0.0
        %2230 = vmatprep.subr.mxu0 0.0
        %2231 = vmatpush1.xpose.msra.mxu0 0.0
        %2232 = vmatprep.subr.mxu0 0.0
        %2233 = vmatpush1.xpose.msra.mxu0 0.0
        %2234 = vmatprep.subr.mxu0 0.0
        %2235 = vmatpush1.xpose.msra.mxu0 0.0
        %2236 = vmatprep.subr.mxu0 0.0
        %2237 = vmatpush1.xpose.msra.mxu0 0.0
        %2238 = vmatprep.subr.mxu0 0.0
        %2239 = vmatpush1.xpose.msra.mxu0 0.0
        %2240 = vmatprep.mubr.f32.mxu0 0.0
        %v2241 = vand.u32 %v1993, 4294901760
        %v2242 = vsub.f32 %v1993, %v2241
        %2243 = vmatmul.mubr.f32.gmra.mrb[0].mxu0 %v2242
        %v2244 = vpop.f32.mrb[0].mxu0
        %v2245 = vadd.f32 %v2163, %v2244
        %v2246 = vpop.f32.mrb[0].mxu0
        %2247 = vmatprep.mubr.f32.mxu0 0.0
        %v2248 = vand.u32 %v1996, 4294901760
        %v2249 = vsub.f32 %v1996, %v2248
        %2250 = vmatmul.mubr.f32.gmra.mrb[0].mxu0 %v2249
        %v2251 = vpop.f32.mrb[0].mxu0
        %v2252 = vadd.f32 %v2169, %v2251
        %v2253 = vpop.f32.mrb[0].mxu0
        %2254 = vdwg.mxu0
        %2255 = vmatprep.subr.mxu0 0.0
        %v2256 = vand.u32 %v1459, 4294901760
        %2257 = vmatpush1.xpose.msra.mxu0 %v2256
        %2258 = vmatprep.subr.mxu0 0.0
        %v2259 = vand.u32 %v1462, 4294901760
        %2260 = vmatpush1.xpose.msra.mxu0 %v2259
        %2261 = vmatprep.subr.mxu0 0.0
        %2262 = vmatpush1.xpose.msra.mxu0 0.0
        %2263 = vmatprep.subr.mxu0 0.0
        %2264 = vmatpush1.xpose.msra.mxu0 0.0
        %2265 = vmatprep.subr.mxu0 0.0
        %2266 = vmatpush1.xpose.msra.mxu0 0.0
        %2267 = vmatprep.subr.mxu0 0.0
        %2268 = vmatpush1.xpose.msra.mxu0 0.0
        %2269 = vmatprep.subr.mxu0 0.0
        %2270 = vmatpush1.xpose.msra.mxu0 0.0
        %2271 = vmatprep.subr.mxu0 0.0
        %2272 = vmatpush1.xpose.msra.mxu0 0.0
        %2273 = vmatprep.subr.mxu0 0.0
        %2274 = vmatpush1.xpose.msra.mxu0 0.0
        %2275 = vmatprep.subr.mxu0 0.0
        %2276 = vmatpush1.xpose.msra.mxu0 0.0
        %2277 = vmatprep.subr.mxu0 0.0
        %2278 = vmatpush1.xpose.msra.mxu0 0.0
        %2279 = vmatprep.subr.mxu0 0.0
        %2280 = vmatpush1.xpose.msra.mxu0 0.0
        %2281 = vmatprep.subr.mxu0 0.0
        %2282 = vmatpush1.xpose.msra.mxu0 0.0
        %2283 = vmatprep.subr.mxu0 0.0
        %2284 = vmatpush1.xpose.msra.mxu0 0.0
        %2285 = vmatprep.subr.mxu0 0.0
        %2286 = vmatpush1.xpose.msra.mxu0 0.0
        %2287 = vmatprep.subr.mxu0 0.0
        %2288 = vmatpush1.xpose.msra.mxu0 0.0
        %2289 = vmatprep.subr.mxu0 0.0
        %2290 = vmatpush1.xpose.msra.mxu0 0.0
        %2291 = vmatprep.subr.mxu0 0.0
        %2292 = vmatpush1.xpose.msra.mxu0 0.0
        %2293 = vmatprep.subr.mxu0 0.0
        %2294 = vmatpush1.xpose.msra.mxu0 0.0
        %2295 = vmatprep.subr.mxu0 0.0
        %2296 = vmatpush1.xpose.msra.mxu0 0.0
        %2297 = vmatprep.subr.mxu0 0.0
        %2298 = vmatpush1.xpose.msra.mxu0 0.0
        %2299 = vmatprep.subr.mxu0 0.0
        %2300 = vmatpush1.xpose.msra.mxu0 0.0
        %2301 = vmatprep.subr.mxu0 0.0
        %2302 = vmatpush1.xpose.msra.mxu0 0.0
        %2303 = vmatprep.subr.mxu0 0.0
        %2304 = vmatpush1.xpose.msra.mxu0 0.0
        %2305 = vmatprep.subr.mxu0 0.0
        %2306 = vmatpush1.xpose.msra.mxu0 0.0
        %2307 = vmatprep.subr.mxu0 0.0
        %2308 = vmatpush1.xpose.msra.mxu0 0.0
        %2309 = vmatprep.subr.mxu0 0.0
        %2310 = vmatpush1.xpose.msra.mxu0 0.0
        %2311 = vmatprep.subr.mxu0 0.0
        %2312 = vmatpush1.xpose.msra.mxu0 0.0
        %2313 = vmatprep.subr.mxu0 0.0
        %2314 = vmatpush1.xpose.msra.mxu0 0.0
        %2315 = vmatprep.subr.mxu0 0.0
        %2316 = vmatpush1.xpose.msra.mxu0 0.0
        %2317 = vmatprep.subr.mxu0 0.0
        %2318 = vmatpush1.xpose.msra.mxu0 0.0
        %2319 = vmatprep.subr.mxu0 0.0
        %2320 = vmatpush1.xpose.msra.mxu0 0.0
        %2321 = vmatprep.mubr.f32.mxu0 0.0
        %v2322 = vand.u32 %v1993, 4294901760
        %v2323 = vsub.f32 %v1993, %v2322
        %v2324 = vand.u32 %v2323, 4294901760
        %2325 = vmatmul.mubr.f32.gmra.mrb[0].mxu0 %v2324
        %v2326 = vpop.f32.mrb[0].mxu0
        %v2327 = vadd.f32 %v2245, %v2326
        %v2328 = vpop.f32.mrb[0].mxu0
        %2329 = vmatprep.mubr.f32.mxu0 0.0
        %v2330 = vand.u32 %v1996, 4294901760
        %v2331 = vsub.f32 %v1996, %v2330
        %v2332 = vand.u32 %v2331, 4294901760
        %2333 = vmatmul.mubr.f32.gmra.mrb[0].mxu0 %v2332
        %v2334 = vpop.f32.mrb[0].mxu0
        %v2335 = vadd.f32 %v2252, %v2334
        %v2336 = vpop.f32.mrb[0].mxu0
        %2337 = vdwg.mxu0
        %2338 = vmatprep.subr.mxu0 0.0
        %v2339 = vand.u32 %v1459, 4294901760
        %v2340 = vsub.f32 %v1459, %v2339
        %v2341 = vand.u32 %v2340, 4294901760
        %2342 = vmatpush1.xpose.msra.mxu0 %v2341
        %2343 = vmatprep.subr.mxu0 0.0
        %v2344 = vand.u32 %v1462, 4294901760
        %v2345 = vsub.f32 %v1462, %v2344
        %v2346 = vand.u32 %v2345, 4294901760
        %2347 = vmatpush1.xpose.msra.mxu0 %v2346
        %2348 = vmatprep.subr.mxu0 0.0
        %2349 = vmatpush1.xpose.msra.mxu0 0.0
        %2350 = vmatprep.subr.mxu0 0.0
        %2351 = vmatpush1.xpose.msra.mxu0 0.0
        %2352 = vmatprep.subr.mxu0 0.0
        %2353 = vmatpush1.xpose.msra.mxu0 0.0
        %2354 = vmatprep.subr.mxu0 0.0
        %2355 = vmatpush1.xpose.msra.mxu0 0.0
        %2356 = vmatprep.subr.mxu0 0.0
        %2357 = vmatpush1.xpose.msra.mxu0 0.0
        %2358 = vmatprep.subr.mxu0 0.0
        %2359 = vmatpush1.xpose.msra.mxu0 0.0
        %2360 = vmatprep.subr.mxu0 0.0
        %2361 = vmatpush1.xpose.msra.mxu0 0.0
        %2362 = vmatprep.subr.mxu0 0.0
        %2363 = vmatpush1.xpose.msra.mxu0 0.0
        %2364 = vmatprep.subr.mxu0 0.0
        %2365 = vmatpush1.xpose.msra.mxu0 0.0
        %2366 = vmatprep.subr.mxu0 0.0
        %2367 = vmatpush1.xpose.msra.mxu0 0.0
        %2368 = vmatprep.subr.mxu0 0.0
        %2369 = vmatpush1.xpose.msra.mxu0 0.0
        %2370 = vmatprep.subr.mxu0 0.0
        %2371 = vmatpush1.xpose.msra.mxu0 0.0
        %2372 = vmatprep.subr.mxu0 0.0
        %2373 = vmatpush1.xpose.msra.mxu0 0.0
        %2374 = vmatprep.subr.mxu0 0.0
        %2375 = vmatpush1.xpose.msra.mxu0 0.0
        %2376 = vmatprep.subr.mxu0 0.0
        %2377 = vmatpush1.xpose.msra.mxu0 0.0
        %2378 = vmatprep.subr.mxu0 0.0
        %2379 = vmatpush1.xpose.msra.mxu0 0.0
        %2380 = vmatprep.subr.mxu0 0.0
        %2381 = vmatpush1.xpose.msra.mxu0 0.0
        %2382 = vmatprep.subr.mxu0 0.0
        %2383 = vmatpush1.xpose.msra.mxu0 0.0
        %2384 = vmatprep.subr.mxu0 0.0
        %2385 = vmatpush1.xpose.msra.mxu0 0.0
        %2386 = vmatprep.subr.mxu0 0.0
        %2387 = vmatpush1.xpose.msra.mxu0 0.0
        %2388 = vmatprep.subr.mxu0 0.0
        %2389 = vmatpush1.xpose.msra.mxu0 0.0
        %2390 = vmatprep.subr.mxu0 0.0
        %2391 = vmatpush1.xpose.msra.mxu0 0.0
        %2392 = vmatprep.subr.mxu0 0.0
        %2393 = vmatpush1.xpose.msra.mxu0 0.0
        %2394 = vmatprep.subr.mxu0 0.0
        %2395 = vmatpush1.xpose.msra.mxu0 0.0
        %2396 = vmatprep.subr.mxu0 0.0
        %2397 = vmatpush1.xpose.msra.mxu0 0.0
        %2398 = vmatprep.subr.mxu0 0.0
        %2399 = vmatpush1.xpose.msra.mxu0 0.0
        %2400 = vmatprep.subr.mxu0 0.0
        %2401 = vmatpush1.xpose.msra.mxu0 0.0
        %2402 = vmatprep.subr.mxu0 0.0
        %2403 = vmatpush1.xpose.msra.mxu0 0.0
        %2404 = vmatprep.subr.mxu0 0.0
        %2405 = vmatpush1.xpose.msra.mxu0 0.0
        %2406 = vmatprep.subr.mxu0 0.0
        %2407 = vmatpush1.xpose.msra.mxu0 0.0
        %2408 = vmatprep.mubr.f32.mxu0 0.0
        %v2409 = vand.u32 %v1993, 4294901760
        %2410 = vmatmul.mubr.f32.gmra.mrb[0].mxu0 %v2409
        %v2411 = vpop.f32.mrb[0].mxu0
        %v2412 = vadd.f32 %v2327, %v2411
        %v2413 = vpop.f32.mrb[0].mxu0
        %2414 = vmatprep.mubr.f32.mxu0 0.0
        %v2415 = vand.u32 %v1996, 4294901760
        %2416 = vmatmul.mubr.f32.gmra.mrb[0].mxu0 %v2415
        %v2417 = vpop.f32.mrb[0].mxu0
        %v2418 = vadd.f32 %v2335, %v2417
        %v2419 = vpop.f32.mrb[0].mxu0
        %2420 = vdwg.mxu0
        %2421 = vmatprep.subr.mxu0 0.0
        %v2422 = vand.u32 %v1459, 4294901760
        %2423 = vmatpush1.xpose.msra.mxu0 %v2422
        %2424 = vmatprep.subr.mxu0 0.0
        %v2425 = vand.u32 %v1462, 4294901760
        %2426 = vmatpush1.xpose.msra.mxu0 %v2425
        %2427 = vmatprep.subr.mxu0 0.0
        %2428 = vmatpush1.xpose.msra.mxu0 0.0
        %2429 = vmatprep.subr.mxu0 0.0
        %2430 = vmatpush1.xpose.msra.mxu0 0.0
        %2431 = vmatprep.subr.mxu0 0.0
        %2432 = vmatpush1.xpose.msra.mxu0 0.0
        %2433 = vmatprep.subr.mxu0 0.0
        %2434 = vmatpush1.xpose.msra.mxu0 0.0
        %2435 = vmatprep.subr.mxu0 0.0
        %2436 = vmatpush1.xpose.msra.mxu0 0.0
        %2437 = vmatprep.subr.mxu0 0.0
        %2438 = vmatpush1.xpose.msra.mxu0 0.0
        %2439 = vmatprep.subr.mxu0 0.0
        %2440 = vmatpush1.xpose.msra.mxu0 0.0
        %2441 = vmatprep.subr.mxu0 0.0
        %2442 = vmatpush1.xpose.msra.mxu0 0.0
        %2443 = vmatprep.subr.mxu0 0.0
        %2444 = vmatpush1.xpose.msra.mxu0 0.0
        %2445 = vmatprep.subr.mxu0 0.0
        %2446 = vmatpush1.xpose.msra.mxu0 0.0
        %2447 = vmatprep.subr.mxu0 0.0
        %2448 = vmatpush1.xpose.msra.mxu0 0.0
        %2449 = vmatprep.subr.mxu0 0.0
        %2450 = vmatpush1.xpose.msra.mxu0 0.0
        %2451 = vmatprep.subr.mxu0 0.0
        %2452 = vmatpush1.xpose.msra.mxu0 0.0
        %2453 = vmatprep.subr.mxu0 0.0
        %2454 = vmatpush1.xpose.msra.mxu0 0.0
        %2455 = vmatprep.subr.mxu0 0.0
        %2456 = vmatpush1.xpose.msra.mxu0 0.0
        %2457 = vmatprep.subr.mxu0 0.0
        %2458 = vmatpush1.xpose.msra.mxu0 0.0
        %2459 = vmatprep.subr.mxu0 0.0
        %2460 = vmatpush1.xpose.msra.mxu0 0.0
        %2461 = vmatprep.subr.mxu0 0.0
        %2462 = vmatpush1.xpose.msra.mxu0 0.0
        %2463 = vmatprep.subr.mxu0 0.0
        %2464 = vmatpush1.xpose.msra.mxu0 0.0
        %2465 = vmatprep.subr.mxu0 0.0
        %2466 = vmatpush1.xpose.msra.mxu0 0.0
        %2467 = vmatprep.subr.mxu0 0.0
        %2468 = vmatpush1.xpose.msra.mxu0 0.0
        %2469 = vmatprep.subr.mxu0 0.0
        %2470 = vmatpush1.xpose.msra.mxu0 0.0
        %2471 = vmatprep.subr.mxu0 0.0
        %2472 = vmatpush1.xpose.msra.mxu0 0.0
        %2473 = vmatprep.subr.mxu0 0.0
        %2474 = vmatpush1.xpose.msra.mxu0 0.0
        %2475 = vmatprep.subr.mxu0 0.0
        %2476 = vmatpush1.xpose.msra.mxu0 0.0
        %2477 = vmatprep.subr.mxu0 0.0
        %2478 = vmatpush1.xpose.msra.mxu0 0.0
        %2479 = vmatprep.subr.mxu0 0.0
        %2480 = vmatpush1.xpose.msra.mxu0 0.0
        %2481 = vmatprep.subr.mxu0 0.0
        %2482 = vmatpush1.xpose.msra.mxu0 0.0
        %2483 = vmatprep.subr.mxu0 0.0
        %2484 = vmatpush1.xpose.msra.mxu0 0.0
        %2485 = vmatprep.subr.mxu0 0.0
        %2486 = vmatpush1.xpose.msra.mxu0 0.0
        %2487 = vmatprep.mubr.f32.mxu0 0.0
        %v2488 = vand.u32 %v1993, 4294901760
        %2489 = vmatmul.mubr.f32.gmra.mrb[0].mxu0 %v2488
        %v2490 = vpop.f32.mrb[0].mxu0
        %v2491 = vadd.f32 %v2412, %v2490
        %v2492 = vpop.f32.mrb[0].mxu0
        %2493 = vmatprep.mubr.f32.mxu0 0.0
        %v2494 = vand.u32 %v1996, 4294901760
        %2495 = vmatmul.mubr.f32.gmra.mrb[0].mxu0 %v2494
        %v2496 = vpop.f32.mrb[0].mxu0
        %v2497 = vadd.f32 %v2418, %v2496
        %v2498 = vpop.f32.mrb[0].mxu0
        %2499 = vdwg.mxu0
        %v2500 = vtanh.pop %v2491
        %v2501 = vtanh.pop %v2497
        %v2502 = vld [vmem:[%s6] sm:$0xff]
        %v2503 = vld [vmem:[%s6 + $0x8] sm:$0xff]
        %v2504 = vand.u32 2147483647, %v2502
        %v2505 = vand.u32 2147483647, %v2503
        %vm2506 = vcmp.gt.f32.partialorder %v2504, 0.0
        %vm2507 = vcmp.gt.f32.partialorder %v2505, 0.0
        %v2508 = vsel %vm2506, %v2500, 0.0
        %v2509 = vsel %vm2507, %v2501, 0.0
        %vm2510 = vcmask 130048
        %2511 = vst.msk [vmem:[%s358] sm:$0xff] %vm2510, %v2508
        %2512 = vst.msk [vmem:[%s358 + $0x8] sm:$0xff] %vm2510, %v2509
        %s2513 = sand.u32 %s202, 1
        %s2514 = scalar_lea.sflag [#allocation4], %s2513
        %s2515 = sand.u32 %s202, 1
        %s2516 = smul.addr %s2515, 16
        %s2517 = scalar_lea.vmem [#allocation10], %s2516
        // Predicated region
        $region65: #{tpu_custom_call.1} parent=47 // pred_check
          %p2518 = pneg %p212
        $region66: #{tpu_custom_call.1} parent=47 // pred_check_branch
          %2520 = sbr.rel (%p2518) target = $region68
        $region67: #{tpu_custom_call.1} parent=47 // pred_region
          %s2522 = ssub.s32 256, 256
          %2523 = vsyncadd %s2514, %s2522
          %s2524 = smul.addr %s31, 2
          %s2525 = smul.addr %s30, 8
          %s2526 = sadd.s32 %s2524, %s2525
          %s2527 = smul.addr %s2526, 128
          %s2528 = scalar_lea.hbm %s7, %s2527
          %s2529 = sshll.u32 %s2517, 4
          %s2530 = int_to_ptr.vmem [resolvable:$true] %s2529
          %2535 = dma.vmem_to_hbm [thread:$0]  %s2530, 256, %s2528, %s2514, 128, 128, 8
        $region68: #{tpu_custom_call.1} parent=47 // pred_fallthru
          _
      $region48: #{tpu_custom_call.1} parent=5 // pred_fallthru
        _
      %p2536 = scmp.le.s32.totalorder 2, %s21
      // Predicated region
      $region69: #{tpu_custom_call.1} parent=5 // pred_check
        %p2537 = pneg %p2536
      $region70: #{tpu_custom_call.1} parent=5 // pred_check_branch
        %2539 = sbr.rel (%p2537) target = $region72
      $region71: #{tpu_custom_call.1} parent=5 // pred_region
        %s2540 = ssub.s32 %s21, 2
        // Predicated region
        $region73: #{tpu_custom_call.1} parent=71 // pred_check
          %p2541 = pneg %p218
        $region74: #{tpu_custom_call.1} parent=71 // pred_check_branch
          %2543 = sbr.rel (%p2541) target = $region76
        $region75: #{tpu_custom_call.1} parent=71 // pred_region
          %s2544 = sand.u32 %s203, 1
          %s2545 = scalar_lea.sflag [#allocation4], %s2544
          %s2546 = sand.u32 %s203, 1
          %s2547 = smul.addr %s2546, 16
          %s2548 = scalar_lea.vmem [#allocation10], %s2547
          %2549 = dma.done %s2545, 256
        $region76: #{tpu_custom_call.1} parent=71 // pred_fallthru
          _
      $region72: #{tpu_custom_call.1} parent=5 // pred_fallthru
        _
    $region6: #{tpu_custom_call.1} parent=1 // loop_footer
      %s25 = sadd.s32 1, %s21
    $region7: #{tpu_custom_call.1} parent=1 // loop_footer_branch
      %20 = sbr.rel target = $region3
    $region8: #{tpu_custom_call.1} parent=1 // loop_exit
      _
    %2550 = vsyncpa [#allocation3], 1
    %s2551 = scalar_lea.sflag [#allocation3], 1
    %2552 = vsyncpa %s2551, 1
    %2553 = vsyncpa [#allocation6], 1
    %2554 = vsyncpa [#allocation9], 1
    %2555 = vsyncpa [#allocation4], 1
    %s2556 = scalar_lea.sflag [#allocation4], 1
    %2557 = vsyncpa %s2556, 1

</llo_original>
